<compile_context>
chip_gen: v5e
topology: v5e:2x2
jax: 0.10.0
libtpu: 0.0.40
codegen_flags: <defaults>
</compile_context>

<pallas_src>
import math

import jax
import jax.numpy as jnp
from jax import lax
from jax.experimental import pallas as pl
from jax.experimental.pallas import tpu as pltpu


# (dh, dw) spatial taps; index j == (dh + 1) * 3 + (dw + 1)
_SPATIAL_OFFSETS = tuple((dh, dw) for dh in (-1, 0, 1) for dw in (-1, 0, 1))


def _elu(v):
    # ELU(alpha=1): x for x>0 else exp(x)-1 (min() keeps exp finite on the dead branch)
    return jnp.where(v > 0, v, jnp.exp(jnp.minimum(v, 0.0)) - 1.0)


def _tree_sum(terms):
    # Pairwise reduction keeps the adds independent (better VLIW co-issue).
    terms = list(terms)
    while len(terms) > 1:
        nxt = [terms[i] + terms[i + 1] for i in range(0, len(terms) - 1, 2)]
        if len(terms) % 2:
            nxt.append(terms[-1])
        terms = nxt
    return terms[0]


def _make_kernel(Pb):
    def kernel(x_ref, w1_ref, s1_ref, b1_ref, k_ref, msp_ref, mt_ref,
               s2_ref, b2_ref, w2_ref, s3_ref, b3_ref, o_ref):
        # --- fc1: 1x1x1 conv (C -> F) == (F,C) @ (C,Pb) + folded BN + ELU ---
        h = jnp.dot(w1_ref[...], x_ref[...].astype(jnp.bfloat16),
                    preferred_element_type=jnp.float32)              # (F, Pb)
        h = _elu(h * s1_ref[...] + b1_ref[...])

        # --- STConv: depthwise 3x3x3, zero padding 1 (factored rolls + masks) ---
        # 8 spatial lane-rolls, masked by host-precomputed (h, w) validity masks.
        shifted = []
        for j, (dh, dw) in enumerate(_SPATIAL_OFFSETS):
            s = 4 * dh + dw
            sh = h if s == 0 else pltpu.roll(h, shift=(-s) % Pb, axis=1)
            shifted.append(sh if s == 0 else sh * msp_ref[j:j + 1, :])
        # Three independent temporal partial sums; tap-weight columns (F, 1)
        # broadcast over the position lanes.
        accs = []
        for ti in range(3):                                          # dt = ti - 1
            accs.append(_tree_sum(
                [k_ref[:, ti * 9 + j:ti * 9 + j + 1] * shifted[j] for j in range(9)]))
        # Combine with the two temporal (+-16) rolls + t-validity masks.
        sh16 = 16 % Pb
        r_m1 = accs[0] if sh16 == 0 else pltpu.roll(accs[0], shift=sh16, axis=1)
        r_p1 = accs[2] if sh16 == 0 else pltpu.roll(accs[2], shift=Pb - 16, axis=1)
        acc = accs[1] + mt_ref[0:1, :] * r_m1 + mt_ref[1:2, :] * r_p1
        h2 = _elu(acc * s2_ref[...] + b2_ref[...])                   # (F, Pb)

        # --- fc2: 1x1x1 conv (F -> C) == (C,F) @ (F,Pb) + folded BN (no act.) ---
        out = jnp.dot(w2_ref[...], h2.astype(jnp.bfloat16),
                      preferred_element_type=jnp.float32)            # (C, Pb)
        o_ref[...] = (out * s3_ref[...] + b3_ref[...]).astype(o_ref.dtype)

    return kernel


def _build_masks(P, T, bblk, dtype=jnp.float32):
    """0/1 validity masks, periodic over the flattened (batch, position) lanes.

    They also kill cross-batch / wrap-around bleed-through from the rolls:
    every wrapped lane is exactly an out-of-volume (t/h/w) neighbour.
    """
    Pb = bblk * P
    p = jnp.arange(Pb, dtype=jnp.int32)
    h_idx = (p // 4) % 4
    w_idx = p % 4
    t_idx = (p % P) // 16
    msp = jnp.stack([((h_idx + dh >= 0) & (h_idx + dh < 4) &
                      (w_idx + dw >= 0) & (w_idx + dw < 4)).astype(dtype)
                     for dh, dw in _SPATIAL_OFFSETS])                # (9, Pb)
    mt = jnp.stack([(t_idx >= 1).astype(dtype),                      # dt = -1 valid
                    (t_idx + 1 < T).astype(dtype)])                  # dt = +1 valid  (2, Pb)
    return msp, mt


def _pick_bblk(B, P):
    """Batch elements per grid step: whole batch if the slab is small, else the
    largest divisor of B whose lane width stays 128-aligned and modest (keeps
    the per-step tile lane-dense while fitting comfortably in VMEM, incl. v7x)."""
    if B * P <= 4096:
        return B
    best = B                           # full-array block is always legal
    for d in range(1, B):
        if B % d == 0 and (d * P) % 128 == 0 and d * P <= 4096:
            best = d
    return best


def pwff_st_forward(x, params, *, bblk=None):
    """x: (B, P, C) float32 with P % 16 == 0.  Returns (B, P, C)."""
    B, P, C = x.shape
    assert P % 16 == 0, "P must be T*4*4"
    F = params["w1"].shape[0]
    T = P // 16

    if bblk is None:
        bblk = _pick_bblk(B, P)
    assert B % bblk == 0
    Pb = bblk * P
    assert Pb == B * P or Pb % 128 == 0, "block lane width must be 128-aligned"

    msp, mt = _build_masks(P, T, bblk)

    # Channels-major, batch-flattened layout: x_cm[c, b*P + p] = x[b, p, c].
    x_cm = jnp.transpose(x, (2, 0, 1)).reshape(C, B * P)

    out_cm = pl.pallas_call(
        _make_kernel(Pb),
        out_shape=jax.ShapeDtypeStruct((C, B * P), x.dtype),
        grid=(B // bblk,),
        in_specs=[
            pl.BlockSpec((C, Pb), lambda i: (0, i)),    # x slab
            pl.BlockSpec((F, C), lambda i: (0, 0)),     # fc1 weight (bf16)
            pl.BlockSpec((F, 1), lambda i: (0, 0)),     # bn1 scale
            pl.BlockSpec((F, 1), lambda i: (0, 0)),     # bn1 bias
            pl.BlockSpec((F, 27), lambda i: (0, 0)),    # depthwise taps, col = kt*9+kh*3+kw
            pl.BlockSpec((9, Pb), lambda i: (0, 0)),    # spatial (h, w) validity masks
            pl.BlockSpec((2, Pb), lambda i: (0, 0)),    # temporal (t) validity masks
            pl.BlockSpec((F, 1), lambda i: (0, 0)),     # bn2 scale
            pl.BlockSpec((F, 1), lambda i: (0, 0)),     # bn2 bias
            pl.BlockSpec((C, F), lambda i: (0, 0)),     # fc2 weight (bf16)
            pl.BlockSpec((C, 1), lambda i: (0, 0)),     # bn3 scale
            pl.BlockSpec((C, 1), lambda i: (0, 0)),     # bn3 bias
        ],
        out_specs=pl.BlockSpec((C, Pb), lambda i: (0, i)),
        compiler_params=pltpu.CompilerParams(
            dimension_semantics=("parallel",)),  # batch slabs independent (v7x: 2 TCs)
    )(x_cm, params["w1"], params["s1"], params["b1"], params["k27"],
      msp, mt, params["s2"], params["b2"], params["w2"],
      params["s3"], params["b3"])

    return jnp.transpose(out_cm.reshape(C, B, P), (1, 2, 0))


def _fold_bn(gamma, beta, mean, var, eps=1e-5):
    scale = gamma / jnp.sqrt(var + eps)
    bias = beta - mean * scale
    return scale, bias


def _reference(x, w1, dw, w2, bns):
    """Pure-JAX f32 reference mirroring the PyTorch module (BN in eval mode)."""
    B, P, C = x.shape
    F = w1.shape[0]
    T = P // 16
    (s1, b1), (s2, b2), (s3, b3) = bns
    xc = jnp.transpose(x, (0, 2, 1)).reshape(B, C, T, 4, 4)
    y = jnp.einsum("fc,bcthw->bfthw", w1, xc, precision=lax.Precision.HIGHEST)
    y = _elu(y * s1.reshape(1, F, 1, 1, 1) + b1.reshape(1, F, 1, 1, 1))
    y = lax.conv_general_dilated(
        y, dw, window_strides=(1, 1, 1), padding=((1, 1), (1, 1), (1, 1)),
        dimension_numbers=("NCDHW", "OIDHW", "NCDHW"),
        feature_group_count=F, precision=lax.Precision.HIGHEST)
    y = _elu(y * s2.reshape(1, F, 1, 1, 1) + b2.reshape(1, F, 1, 1, 1))
    z = jnp.einsum("cf,bfthw->bcthw", w2, y, precision=lax.Precision.HIGHEST)
    z = z * s3.reshape(1, C, 1, 1, 1) + b3.reshape(1, C, 1, 1, 1)
    return jnp.transpose(z.reshape(B, C, P), (0, 2, 1))


if __name__ == "__main__":
    dim, ff_dim = 32, 64          # dim = C, ff_dim = hidden F
    B, T = 2, 4
    P = T * 16                    # seq length, must be a multiple of 16

    key = jax.random.PRNGKey(0)
    ks = jax.random.split(key, 16)

    x = jax.random.normal(ks[0], (B, P, dim), jnp.float32)

    # Conv weights (bias=False in the PyTorch module); 1x1x1 kernels squeezed.
    w1 = jax.random.normal(ks[1], (ff_dim, dim), jnp.float32) * (1.0 / math.sqrt(dim))
    dw = jax.random.normal(ks[2], (ff_dim, 1, 3, 3, 3), jnp.float32) * (1.0 / math.sqrt(27.0))
    w2 = jax.random.normal(ks[3], (dim, ff_dim), jnp.float32) * (1.0 / math.sqrt(ff_dim))

    def bn(kg, kb, km, kv, n):
        gamma = 1.0 + 0.1 * jax.random.normal(kg, (n,), jnp.float32)
        beta = 0.1 * jax.random.normal(kb, (n,), jnp.float32)
        mean = 0.1 * jax.random.normal(km, (n,), jnp.float32)
        var = 1.0 + 0.25 * jax.random.uniform(kv, (n,), jnp.float32)
        return _fold_bn(gamma, beta, mean, var)

    s1, b1 = bn(ks[4], ks[5], ks[6], ks[7], ff_dim)
    s2, b2 = bn(ks[8], ks[9], ks[10], ks[11], ff_dim)
    s3, b3 = bn(ks[12], ks[13], ks[14], ks[15], dim)

    params = dict(
        w1=w1.astype(jnp.bfloat16),              # (F, C), bf16 MXU path
        s1=s1.reshape(-1, 1), b1=b1.reshape(-1, 1),
        k27=dw.reshape(ff_dim, 27),              # (F, 27): column = kt*9 + kh*3 + kw
        s2=s2.reshape(-1, 1), b2=b2.reshape(-1, 1),
        w2=w2.astype(jnp.bfloat16),              # (C, F), bf16 MXU path
        s3=s3.reshape(-1, 1), b3=b3.reshape(-1, 1),
    )

    out = jax.block_until_ready(pwff_st_forward(x, params))

    ref = _reference(x, w1, dw, w2, ((s1, b1), (s2, b2), (s3, b3)))
    err = float(jnp.max(jnp.abs(out - ref)))
    assert out.shape == (B, P, dim)
    # bf16 matmul inputs (f32 accumulation) vs an f32/HIGHEST reference:
    # bf16-level tolerance.
    assert err < 5e-2, f"max abs error {err}"
    print("KERNEL_OK")
</pallas_src>

<mosaic_0001>
module attributes {stable_mosaic.version = 11 : i64} {
  func.func @kernel(%arg0: i32, %arg1: memref<32x128xf32, #tpu.memory_space<vmem>>, %arg2: memref<64x32xbf16, #tpu.memory_space<vmem>>, %arg3: memref<64x1xf32, #tpu.memory_space<vmem>>, %arg4: memref<64x1xf32, #tpu.memory_space<vmem>>, %arg5: memref<64x27xf32, #tpu.memory_space<vmem>>, %arg6: memref<9x128xf32, #tpu.memory_space<vmem>>, %arg7: memref<2x128xf32, #tpu.memory_space<vmem>>, %arg8: memref<64x1xf32, #tpu.memory_space<vmem>>, %arg9: memref<64x1xf32, #tpu.memory_space<vmem>>, %arg10: memref<32x64xbf16, #tpu.memory_space<vmem>>, %arg11: memref<32x1xf32, #tpu.memory_space<vmem>>, %arg12: memref<32x1xf32, #tpu.memory_space<vmem>>, %arg13: memref<32x128xf32, #tpu.memory_space<vmem>>) attributes {dimension_semantics = [#tpu.dimension_semantics<parallel>], iteration_bounds = array<i64: 1>, scalar_prefetch = 0 : i64, scratch_operands = 0 : i64, tpu.core_type = #tpu.core_type<tc>, window_params = [{transform_indices = @transform_0, window_bounds = array<i64: 32, 128>}, {pipeline_mode = #tpu.pipeline_mode<synchronous>, transform_indices = @transform_1, window_bounds = array<i64: 64, 32>}, {pipeline_mode = #tpu.pipeline_mode<synchronous>, transform_indices = @transform_2, window_bounds = array<i64: 64, 1>}, {pipeline_mode = #tpu.pipeline_mode<synchronous>, transform_indices = @transform_3, window_bounds = array<i64: 64, 1>}, {pipeline_mode = #tpu.pipeline_mode<synchronous>, transform_indices = @transform_4, window_bounds = array<i64: 64, 27>}, {pipeline_mode = #tpu.pipeline_mode<synchronous>, transform_indices = @transform_5, window_bounds = array<i64: 9, 128>}, {pipeline_mode = #tpu.pipeline_mode<synchronous>, transform_indices = @transform_6, window_bounds = array<i64: 2, 128>}, {pipeline_mode = #tpu.pipeline_mode<synchronous>, transform_indices = @transform_7, window_bounds = array<i64: 64, 1>}, {pipeline_mode = #tpu.pipeline_mode<synchronous>, transform_indices = @transform_8, window_bounds = array<i64: 64, 1>}, {pipeline_mode = #tpu.pipeline_mode<synchronous>, transform_indices = @transform_9, window_bounds = array<i64: 32, 64>}, {pipeline_mode = #tpu.pipeline_mode<synchronous>, transform_indices = @transform_10, window_bounds = array<i64: 32, 1>}, {pipeline_mode = #tpu.pipeline_mode<synchronous>, transform_indices = @transform_11, window_bounds = array<i64: 32, 1>}, {transform_indices = @transform_12, window_bounds = array<i64: 32, 128>}]} {
    %c0 = arith.constant 0 : index
    %c0_0 = arith.constant 0 : index
    %0 = vector.load %arg2[%c0, %c0_0] : memref<64x32xbf16, #tpu.memory_space<vmem>>, vector<64x32xbf16>
    %c0_1 = arith.constant 0 : index
    %c0_2 = arith.constant 0 : index
    %1 = vector.load %arg1[%c0_1, %c0_2] : memref<32x128xf32, #tpu.memory_space<vmem>>, vector<32x128xf32>
    %2 = arith.truncf %1 : vector<32x128xf32> to vector<32x128xbf16>
    %cst = arith.constant dense<0.000000e+00> : vector<64x128xf32>
    %3 = tpu.matmul %0, %2, %cst {dimension_numbers = #tpu.dot_dimension_numbers<[1], [0], [0], [1], [0, 0, 1, 1], [], []>} : vector<64x32xbf16>, vector<32x128xbf16>, vector<64x128xf32> -> vector<64x128xf32>
    %c0_3 = arith.constant 0 : index
    %c0_4 = arith.constant 0 : index
    %4 = vector.load %arg3[%c0_3, %c0_4] : memref<64x1xf32, #tpu.memory_space<vmem>>, vector<64x1xf32>
    %5 = vector.broadcast %4 : vector<64x1xf32> to vector<64x128xf32>
    %6 = arith.mulf %3, %5 : vector<64x128xf32>
    %c0_5 = arith.constant 0 : index
    %c0_6 = arith.constant 0 : index
    %7 = vector.load %arg4[%c0_5, %c0_6] : memref<64x1xf32, #tpu.memory_space<vmem>>, vector<64x1xf32>
    %8 = vector.broadcast %7 : vector<64x1xf32> to vector<64x128xf32>
    %9 = arith.addf %6, %8 : vector<64x128xf32>
    %cst_7 = arith.constant 0.000000e+00 : f32
    %10 = vector.broadcast %cst_7 : f32 to vector<64x128xf32>
    %11 = arith.cmpf ogt, %9, %10 : vector<64x128xf32>
    %cst_8 = arith.constant 0.000000e+00 : f32
    %12 = vector.broadcast %cst_8 : f32 to vector<64x128xf32>
    %13 = arith.minimumf %9, %12 : vector<64x128xf32>
    %14 = math.exp %13 : vector<64x128xf32>
    %cst_9 = arith.constant 1.000000e+00 : f32
    %15 = vector.broadcast %cst_9 : f32 to vector<64x128xf32>
    %16 = arith.subf %14, %15 : vector<64x128xf32>
    %17 = arith.select %11, %9, %16 : vector<64x128xi1>, vector<64x128xf32>
    %c5_i32 = arith.constant 5 : i32
    %18 = tpu.dynamic_rotate %17 by %c5_i32 dim 1 : vector<64x128xf32>, i32 -> vector<64x128xf32>
    %c0_10 = arith.constant 0 : index
    %c0_11 = arith.constant 0 : index
    %19 = vector.load %arg6[%c0_10, %c0_11] : memref<9x128xf32, #tpu.memory_space<vmem>>, vector<1x128xf32>
    %20 = vector.broadcast %19 : vector<1x128xf32> to vector<64x128xf32>
    %21 = arith.mulf %18, %20 : vector<64x128xf32>
    %c4_i32 = arith.constant 4 : i32
    %22 = tpu.dynamic_rotate %17 by %c4_i32 dim 1 : vector<64x128xf32>, i32 -> vector<64x128xf32>
    %c1 = arith.constant 1 : index
    %c0_12 = arith.constant 0 : index
    %23 = vector.load %arg6[%c1, %c0_12] : memref<9x128xf32, #tpu.memory_space<vmem>>, vector<1x128xf32>
    %24 = vector.broadcast %23 : vector<1x128xf32> to vector<64x128xf32>
    %25 = arith.mulf %22, %24 : vector<64x128xf32>
    %c3_i32 = arith.constant 3 : i32
    %26 = tpu.dynamic_rotate %17 by %c3_i32 dim 1 : vector<64x128xf32>, i32 -> vector<64x128xf32>
    %c2 = arith.constant 2 : index
    %c0_13 = arith.constant 0 : index
    %27 = vector.load %arg6[%c2, %c0_13] : memref<9x128xf32, #tpu.memory_space<vmem>>, vector<1x128xf32>
    %28 = vector.broadcast %27 : vector<1x128xf32> to vector<64x128xf32>
    %29 = arith.mulf %26, %28 : vector<64x128xf32>
    %c1_i32 = arith.constant 1 : i32
    %30 = tpu.dynamic_rotate %17 by %c1_i32 dim 1 : vector<64x128xf32>, i32 -> vector<64x128xf32>
    %c3 = arith.constant 3 : index
    %c0_14 = arith.constant 0 : index
    %31 = vector.load %arg6[%c3, %c0_14] : memref<9x128xf32, #tpu.memory_space<vmem>>, vector<1x128xf32>
    %32 = vector.broadcast %31 : vector<1x128xf32> to vector<64x128xf32>
    %33 = arith.mulf %30, %32 : vector<64x128xf32>
    %c127_i32 = arith.constant 127 : i32
    %34 = tpu.dynamic_rotate %17 by %c127_i32 dim 1 : vector<64x128xf32>, i32 -> vector<64x128xf32>
    %c5 = arith.constant 5 : index
    %c0_15 = arith.constant 0 : index
    %35 = vector.load %arg6[%c5, %c0_15] : memref<9x128xf32, #tpu.memory_space<vmem>>, vector<1x128xf32>
    %36 = vector.broadcast %35 : vector<1x128xf32> to vector<64x128xf32>
    %37 = arith.mulf %34, %36 : vector<64x128xf32>
    %c125_i32 = arith.constant 125 : i32
    %38 = tpu.dynamic_rotate %17 by %c125_i32 dim 1 : vector<64x128xf32>, i32 -> vector<64x128xf32>
    %c6 = arith.constant 6 : index
    %c0_16 = arith.constant 0 : index
    %39 = vector.load %arg6[%c6, %c0_16] : memref<9x128xf32, #tpu.memory_space<vmem>>, vector<1x128xf32>
    %40 = vector.broadcast %39 : vector<1x128xf32> to vector<64x128xf32>
    %41 = arith.mulf %38, %40 : vector<64x128xf32>
    %c124_i32 = arith.constant 124 : i32
    %42 = tpu.dynamic_rotate %17 by %c124_i32 dim 1 : vector<64x128xf32>, i32 -> vector<64x128xf32>
    %c7 = arith.constant 7 : index
    %c0_17 = arith.constant 0 : index
    %43 = vector.load %arg6[%c7, %c0_17] : memref<9x128xf32, #tpu.memory_space<vmem>>, vector<1x128xf32>
    %44 = vector.broadcast %43 : vector<1x128xf32> to vector<64x128xf32>
    %45 = arith.mulf %42, %44 : vector<64x128xf32>
    %c123_i32 = arith.constant 123 : i32
    %46 = tpu.dynamic_rotate %17 by %c123_i32 dim 1 : vector<64x128xf32>, i32 -> vector<64x128xf32>
    %c8 = arith.constant 8 : index
    %c0_18 = arith.constant 0 : index
    %47 = vector.load %arg6[%c8, %c0_18] : memref<9x128xf32, #tpu.memory_space<vmem>>, vector<1x128xf32>
    %48 = vector.broadcast %47 : vector<1x128xf32> to vector<64x128xf32>
    %49 = arith.mulf %46, %48 : vector<64x128xf32>
    %c0_19 = arith.constant 0 : index
    %c0_20 = arith.constant 0 : index
    %50 = vector.load %arg5[%c0_19, %c0_20] : memref<64x27xf32, #tpu.memory_space<vmem>>, vector<64x1xf32>
    %51 = vector.broadcast %50 : vector<64x1xf32> to vector<64x128xf32>
    %52 = arith.mulf %51, %21 : vector<64x128xf32>
    %c0_21 = arith.constant 0 : index
    %c1_22 = arith.constant 1 : index
    %53 = vector.load %arg5[%c0_21, %c1_22] : memref<64x27xf32, #tpu.memory_space<vmem>>, vector<64x1xf32>
    %54 = vector.broadcast %53 : vector<64x1xf32> to vector<64x128xf32>
    %55 = arith.mulf %54, %25 : vector<64x128xf32>
    %c0_23 = arith.constant 0 : index
    %c2_24 = arith.constant 2 : index
    %56 = vector.load %arg5[%c0_23, %c2_24] : memref<64x27xf32, #tpu.memory_space<vmem>>, vector<64x1xf32>
    %57 = vector.broadcast %56 : vector<64x1xf32> to vector<64x128xf32>
    %58 = arith.mulf %57, %29 : vector<64x128xf32>
    %c0_25 = arith.constant 0 : index
    %c3_26 = arith.constant 3 : index
    %59 = vector.load %arg5[%c0_25, %c3_26] : memref<64x27xf32, #tpu.memory_space<vmem>>, vector<64x1xf32>
    %60 = vector.broadcast %59 : vector<64x1xf32> to vector<64x128xf32>
    %61 = arith.mulf %60, %33 : vector<64x128xf32>
    %c0_27 = arith.constant 0 : index
    %c4 = arith.constant 4 : index
    %62 = vector.load %arg5[%c0_27, %c4] : memref<64x27xf32, #tpu.memory_space<vmem>>, vector<64x1xf32>
    %63 = vector.broadcast %62 : vector<64x1xf32> to vector<64x128xf32>
    %64 = arith.mulf %63, %17 : vector<64x128xf32>
    %c0_28 = arith.constant 0 : index
    %c5_29 = arith.constant 5 : index
    %65 = vector.load %arg5[%c0_28, %c5_29] : memref<64x27xf32, #tpu.memory_space<vmem>>, vector<64x1xf32>
    %66 = vector.broadcast %65 : vector<64x1xf32> to vector<64x128xf32>
    %67 = arith.mulf %66, %37 : vector<64x128xf32>
    %c0_30 = arith.constant 0 : index
    %c6_31 = arith.constant 6 : index
    %68 = vector.load %arg5[%c0_30, %c6_31] : memref<64x27xf32, #tpu.memory_space<vmem>>, vector<64x1xf32>
    %69 = vector.broadcast %68 : vector<64x1xf32> to vector<64x128xf32>
    %70 = arith.mulf %69, %41 : vector<64x128xf32>
    %c0_32 = arith.constant 0 : index
    %c7_33 = arith.constant 7 : index
    %71 = vector.load %arg5[%c0_32, %c7_33] : memref<64x27xf32, #tpu.memory_space<vmem>>, vector<64x1xf32>
    %72 = vector.broadcast %71 : vector<64x1xf32> to vector<64x128xf32>
    %73 = arith.mulf %72, %45 : vector<64x128xf32>
    %c0_34 = arith.constant 0 : index
    %c8_35 = arith.constant 8 : index
    %74 = vector.load %arg5[%c0_34, %c8_35] : memref<64x27xf32, #tpu.memory_space<vmem>>, vector<64x1xf32>
    %75 = vector.broadcast %74 : vector<64x1xf32> to vector<64x128xf32>
    %76 = arith.mulf %75, %49 : vector<64x128xf32>
    %77 = arith.addf %52, %55 : vector<64x128xf32>
    %78 = arith.addf %58, %61 : vector<64x128xf32>
    %79 = arith.addf %64, %67 : vector<64x128xf32>
    %80 = arith.addf %70, %73 : vector<64x128xf32>
    %81 = arith.addf %77, %78 : vector<64x128xf32>
    %82 = arith.addf %79, %80 : vector<64x128xf32>
    %83 = arith.addf %81, %82 : vector<64x128xf32>
    %84 = arith.addf %83, %76 : vector<64x128xf32>
    %c0_36 = arith.constant 0 : index
    %c9 = arith.constant 9 : index
    %85 = vector.load %arg5[%c0_36, %c9] : memref<64x27xf32, #tpu.memory_space<vmem>>, vector<64x1xf32>
    %86 = vector.broadcast %85 : vector<64x1xf32> to vector<64x128xf32>
    %87 = arith.mulf %86, %21 : vector<64x128xf32>
    %c0_37 = arith.constant 0 : index
    %c10 = arith.constant 10 : index
    %88 = vector.load %arg5[%c0_37, %c10] : memref<64x27xf32, #tpu.memory_space<vmem>>, vector<64x1xf32>
    %89 = vector.broadcast %88 : vector<64x1xf32> to vector<64x128xf32>
    %90 = arith.mulf %89, %25 : vector<64x128xf32>
    %c0_38 = arith.constant 0 : index
    %c11 = arith.constant 11 : index
    %91 = vector.load %arg5[%c0_38, %c11] : memref<64x27xf32, #tpu.memory_space<vmem>>, vector<64x1xf32>
    %92 = vector.broadcast %91 : vector<64x1xf32> to vector<64x128xf32>
    %93 = arith.mulf %92, %29 : vector<64x128xf32>
    %c0_39 = arith.constant 0 : index
    %c12 = arith.constant 12 : index
    %94 = vector.load %arg5[%c0_39, %c12] : memref<64x27xf32, #tpu.memory_space<vmem>>, vector<64x1xf32>
    %95 = vector.broadcast %94 : vector<64x1xf32> to vector<64x128xf32>
    %96 = arith.mulf %95, %33 : vector<64x128xf32>
    %c0_40 = arith.constant 0 : index
    %c13 = arith.constant 13 : index
    %97 = vector.load %arg5[%c0_40, %c13] : memref<64x27xf32, #tpu.memory_space<vmem>>, vector<64x1xf32>
    %98 = vector.broadcast %97 : vector<64x1xf32> to vector<64x128xf32>
    %99 = arith.mulf %98, %17 : vector<64x128xf32>
    %c0_41 = arith.constant 0 : index
    %c14 = arith.constant 14 : index
    %100 = vector.load %arg5[%c0_41, %c14] : memref<64x27xf32, #tpu.memory_space<vmem>>, vector<64x1xf32>
    %101 = vector.broadcast %100 : vector<64x1xf32> to vector<64x128xf32>
    %102 = arith.mulf %101, %37 : vector<64x128xf32>
    %c0_42 = arith.constant 0 : index
    %c15 = arith.constant 15 : index
    %103 = vector.load %arg5[%c0_42, %c15] : memref<64x27xf32, #tpu.memory_space<vmem>>, vector<64x1xf32>
    %104 = vector.broadcast %103 : vector<64x1xf32> to vector<64x128xf32>
    %105 = arith.mulf %104, %41 : vector<64x128xf32>
    %c0_43 = arith.constant 0 : index
    %c16 = arith.constant 16 : index
    %106 = vector.load %arg5[%c0_43, %c16] : memref<64x27xf32, #tpu.memory_space<vmem>>, vector<64x1xf32>
    %107 = vector.broadcast %106 : vector<64x1xf32> to vector<64x128xf32>
    %108 = arith.mulf %107, %45 : vector<64x128xf32>
    %c0_44 = arith.constant 0 : index
    %c17 = arith.constant 17 : index
    %109 = vector.load %arg5[%c0_44, %c17] : memref<64x27xf32, #tpu.memory_space<vmem>>, vector<64x1xf32>
    %110 = vector.broadcast %109 : vector<64x1xf32> to vector<64x128xf32>
    %111 = arith.mulf %110, %49 : vector<64x128xf32>
    %112 = arith.addf %87, %90 : vector<64x128xf32>
    %113 = arith.addf %93, %96 : vector<64x128xf32>
    %114 = arith.addf %99, %102 : vector<64x128xf32>
    %115 = arith.addf %105, %108 : vector<64x128xf32>
    %116 = arith.addf %112, %113 : vector<64x128xf32>
    %117 = arith.addf %114, %115 : vector<64x128xf32>
    %118 = arith.addf %116, %117 : vector<64x128xf32>
    %119 = arith.addf %118, %111 : vector<64x128xf32>
    %c0_45 = arith.constant 0 : index
    %c18 = arith.constant 18 : index
    %120 = vector.load %arg5[%c0_45, %c18] : memref<64x27xf32, #tpu.memory_space<vmem>>, vector<64x1xf32>
    %121 = vector.broadcast %120 : vector<64x1xf32> to vector<64x128xf32>
    %122 = arith.mulf %121, %21 : vector<64x128xf32>
    %c0_46 = arith.constant 0 : index
    %c19 = arith.constant 19 : index
    %123 = vector.load %arg5[%c0_46, %c19] : memref<64x27xf32, #tpu.memory_space<vmem>>, vector<64x1xf32>
    %124 = vector.broadcast %123 : vector<64x1xf32> to vector<64x128xf32>
    %125 = arith.mulf %124, %25 : vector<64x128xf32>
    %c0_47 = arith.constant 0 : index
    %c20 = arith.constant 20 : index
    %126 = vector.load %arg5[%c0_47, %c20] : memref<64x27xf32, #tpu.memory_space<vmem>>, vector<64x1xf32>
    %127 = vector.broadcast %126 : vector<64x1xf32> to vector<64x128xf32>
    %128 = arith.mulf %127, %29 : vector<64x128xf32>
    %c0_48 = arith.constant 0 : index
    %c21 = arith.constant 21 : index
    %129 = vector.load %arg5[%c0_48, %c21] : memref<64x27xf32, #tpu.memory_space<vmem>>, vector<64x1xf32>
    %130 = vector.broadcast %129 : vector<64x1xf32> to vector<64x128xf32>
    %131 = arith.mulf %130, %33 : vector<64x128xf32>
    %c0_49 = arith.constant 0 : index
    %c22 = arith.constant 22 : index
    %132 = vector.load %arg5[%c0_49, %c22] : memref<64x27xf32, #tpu.memory_space<vmem>>, vector<64x1xf32>
    %133 = vector.broadcast %132 : vector<64x1xf32> to vector<64x128xf32>
    %134 = arith.mulf %133, %17 : vector<64x128xf32>
    %c0_50 = arith.constant 0 : index
    %c23 = arith.constant 23 : index
    %135 = vector.load %arg5[%c0_50, %c23] : memref<64x27xf32, #tpu.memory_space<vmem>>, vector<64x1xf32>
    %136 = vector.broadcast %135 : vector<64x1xf32> to vector<64x128xf32>
    %137 = arith.mulf %136, %37 : vector<64x128xf32>
    %c0_51 = arith.constant 0 : index
    %c24 = arith.constant 24 : index
    %138 = vector.load %arg5[%c0_51, %c24] : memref<64x27xf32, #tpu.memory_space<vmem>>, vector<64x1xf32>
    %139 = vector.broadcast %138 : vector<64x1xf32> to vector<64x128xf32>
    %140 = arith.mulf %139, %41 : vector<64x128xf32>
    %c0_52 = arith.constant 0 : index
    %c25 = arith.constant 25 : index
    %141 = vector.load %arg5[%c0_52, %c25] : memref<64x27xf32, #tpu.memory_space<vmem>>, vector<64x1xf32>
    %142 = vector.broadcast %141 : vector<64x1xf32> to vector<64x128xf32>
    %143 = arith.mulf %142, %45 : vector<64x128xf32>
    %c0_53 = arith.constant 0 : index
    %c26 = arith.constant 26 : index
    %144 = vector.load %arg5[%c0_53, %c26] : memref<64x27xf32, #tpu.memory_space<vmem>>, vector<64x1xf32>
    %145 = vector.broadcast %144 : vector<64x1xf32> to vector<64x128xf32>
    %146 = arith.mulf %145, %49 : vector<64x128xf32>
    %147 = arith.addf %122, %125 : vector<64x128xf32>
    %148 = arith.addf %128, %131 : vector<64x128xf32>
    %149 = arith.addf %134, %137 : vector<64x128xf32>
    %150 = arith.addf %140, %143 : vector<64x128xf32>
    %151 = arith.addf %147, %148 : vector<64x128xf32>
    %152 = arith.addf %149, %150 : vector<64x128xf32>
    %153 = arith.addf %151, %152 : vector<64x128xf32>
    %154 = arith.addf %153, %146 : vector<64x128xf32>
    %c16_i32 = arith.constant 16 : i32
    %155 = tpu.dynamic_rotate %84 by %c16_i32 dim 1 : vector<64x128xf32>, i32 -> vector<64x128xf32>
    %c112_i32 = arith.constant 112 : i32
    %156 = tpu.dynamic_rotate %154 by %c112_i32 dim 1 : vector<64x128xf32>, i32 -> vector<64x128xf32>
    %c0_54 = arith.constant 0 : index
    %c0_55 = arith.constant 0 : index
    %157 = vector.load %arg7[%c0_54, %c0_55] : memref<2x128xf32, #tpu.memory_space<vmem>>, vector<1x128xf32>
    %158 = vector.broadcast %157 : vector<1x128xf32> to vector<64x128xf32>
    %159 = arith.mulf %158, %155 : vector<64x128xf32>
    %160 = arith.addf %119, %159 : vector<64x128xf32>
    %c1_56 = arith.constant 1 : index
    %c0_57 = arith.constant 0 : index
    %161 = vector.load %arg7[%c1_56, %c0_57] : memref<2x128xf32, #tpu.memory_space<vmem>>, vector<1x128xf32>
    %162 = vector.broadcast %161 : vector<1x128xf32> to vector<64x128xf32>
    %163 = arith.mulf %162, %156 : vector<64x128xf32>
    %164 = arith.addf %160, %163 : vector<64x128xf32>
    %c0_58 = arith.constant 0 : index
    %c0_59 = arith.constant 0 : index
    %165 = vector.load %arg8[%c0_58, %c0_59] : memref<64x1xf32, #tpu.memory_space<vmem>>, vector<64x1xf32>
    %166 = vector.broadcast %165 : vector<64x1xf32> to vector<64x128xf32>
    %167 = arith.mulf %164, %166 : vector<64x128xf32>
    %c0_60 = arith.constant 0 : index
    %c0_61 = arith.constant 0 : index
    %168 = vector.load %arg9[%c0_60, %c0_61] : memref<64x1xf32, #tpu.memory_space<vmem>>, vector<64x1xf32>
    %169 = vector.broadcast %168 : vector<64x1xf32> to vector<64x128xf32>
    %170 = arith.addf %167, %169 : vector<64x128xf32>
    %cst_62 = arith.constant 0.000000e+00 : f32
    %171 = vector.broadcast %cst_62 : f32 to vector<64x128xf32>
    %172 = arith.cmpf ogt, %170, %171 : vector<64x128xf32>
    %cst_63 = arith.constant 0.000000e+00 : f32
    %173 = vector.broadcast %cst_63 : f32 to vector<64x128xf32>
    %174 = arith.minimumf %170, %173 : vector<64x128xf32>
    %175 = math.exp %174 : vector<64x128xf32>
    %cst_64 = arith.constant 1.000000e+00 : f32
    %176 = vector.broadcast %cst_64 : f32 to vector<64x128xf32>
    %177 = arith.subf %175, %176 : vector<64x128xf32>
    %178 = arith.select %172, %170, %177 : vector<64x128xi1>, vector<64x128xf32>
    %c0_65 = arith.constant 0 : index
    %c0_66 = arith.constant 0 : index
    %179 = vector.load %arg10[%c0_65, %c0_66] : memref<32x64xbf16, #tpu.memory_space<vmem>>, vector<32x64xbf16>
    %180 = arith.truncf %178 : vector<64x128xf32> to vector<64x128xbf16>
    %cst_67 = arith.constant dense<0.000000e+00> : vector<32x128xf32>
    %181 = tpu.matmul %179, %180, %cst_67 {dimension_numbers = #tpu.dot_dimension_numbers<[1], [0], [0], [1], [0, 0, 1, 1], [], []>} : vector<32x64xbf16>, vector<64x128xbf16>, vector<32x128xf32> -> vector<32x128xf32>
    %c0_68 = arith.constant 0 : index
    %c0_69 = arith.constant 0 : index
    %182 = vector.load %arg11[%c0_68, %c0_69] : memref<32x1xf32, #tpu.memory_space<vmem>>, vector<32x1xf32>
    %183 = vector.broadcast %182 : vector<32x1xf32> to vector<32x128xf32>
    %184 = arith.mulf %181, %183 : vector<32x128xf32>
    %c0_70 = arith.constant 0 : index
    %c0_71 = arith.constant 0 : index
    %185 = vector.load %arg12[%c0_70, %c0_71] : memref<32x1xf32, #tpu.memory_space<vmem>>, vector<32x1xf32>
    %186 = vector.broadcast %185 : vector<32x1xf32> to vector<32x128xf32>
    %187 = arith.addf %184, %186 : vector<32x128xf32>
    %c0_72 = arith.constant 0 : index
    %c0_73 = arith.constant 0 : index
    %188 = vector.load %arg13[%c0_72, %c0_73] : memref<32x128xf32, #tpu.memory_space<vmem>>, vector<32x128xf32>
    tpu.vector_store %arg13[%c0_72, %c0_73], %187 {strides = array<i32>} : memref<32x128xf32, #tpu.memory_space<vmem>>, vector<32x128xf32>,
    return
  }
  func.func @transform_0(%arg0: i32) -> (i32, i32) {
    %c0_i32 = arith.constant 0 : i32
    %c0_i32_0 = arith.constant 0 : i32
    return %c0_i32, %arg0 : i32, i32
  }
  func.func @transform_1(%arg0: i32) -> (i32, i32) {
    %c0_i32 = arith.constant 0 : i32
    %c0_i32_0 = arith.constant 0 : i32
    %c0_i32_1 = arith.constant 0 : i32
    return %c0_i32, %c0_i32_0 : i32, i32
  }
  func.func @transform_2(%arg0: i32) -> (i32, i32) {
    %c0_i32 = arith.constant 0 : i32
    %c0_i32_0 = arith.constant 0 : i32
    %c0_i32_1 = arith.constant 0 : i32
    return %c0_i32, %c0_i32_0 : i32, i32
  }
  func.func @transform_3(%arg0: i32) -> (i32, i32) {
    %c0_i32 = arith.constant 0 : i32
    %c0_i32_0 = arith.constant 0 : i32
    %c0_i32_1 = arith.constant 0 : i32
    return %c0_i32, %c0_i32_0 : i32, i32
  }
  func.func @transform_4(%arg0: i32) -> (i32, i32) {
    %c0_i32 = arith.constant 0 : i32
    %c0_i32_0 = arith.constant 0 : i32
    %c0_i32_1 = arith.constant 0 : i32
    return %c0_i32, %c0_i32_0 : i32, i32
  }
  func.func @transform_5(%arg0: i32) -> (i32, i32) {
    %c0_i32 = arith.constant 0 : i32
    %c0_i32_0 = arith.constant 0 : i32
    %c0_i32_1 = arith.constant 0 : i32
    return %c0_i32, %c0_i32_0 : i32, i32
  }
  func.func @transform_6(%arg0: i32) -> (i32, i32) {
    %c0_i32 = arith.constant 0 : i32
    %c0_i32_0 = arith.constant 0 : i32
    %c0_i32_1 = arith.constant 0 : i32
    return %c0_i32, %c0_i32_0 : i32, i32
  }
  func.func @transform_7(%arg0: i32) -> (i32, i32) {
    %c0_i32 = arith.constant 0 : i32
    %c0_i32_0 = arith.constant 0 : i32
    %c0_i32_1 = arith.constant 0 : i32
    return %c0_i32, %c0_i32_0 : i32, i32
  }
  func.func @transform_8(%arg0: i32) -> (i32, i32) {
    %c0_i32 = arith.constant 0 : i32
    %c0_i32_0 = arith.constant 0 : i32
    %c0_i32_1 = arith.constant 0 : i32
    return %c0_i32, %c0_i32_0 : i32, i32
  }
  func.func @transform_9(%arg0: i32) -> (i32, i32) {
    %c0_i32 = arith.constant 0 : i32
    %c0_i32_0 = arith.constant 0 : i32
    %c0_i32_1 = arith.constant 0 : i32
    return %c0_i32, %c0_i32_0 : i32, i32
  }
  func.func @transform_10(%arg0: i32) -> (i32, i32) {
    %c0_i32 = arith.constant 0 : i32
    %c0_i32_0 = arith.constant 0 : i32
    %c0_i32_1 = arith.constant 0 : i32
    return %c0_i32, %c0_i32_0 : i32, i32
  }
  func.func @transform_11(%arg0: i32) -> (i32, i32) {
    %c0_i32 = arith.constant 0 : i32
    %c0_i32_0 = arith.constant 0 : i32
    %c0_i32_1 = arith.constant 0 : i32
    return %c0_i32, %c0_i32_0 : i32, i32
  }
  func.func @transform_12(%arg0: i32) -> (i32, i32) {
    %c0_i32 = arith.constant 0 : i32
    %c0_i32_0 = arith.constant 0 : i32
    return %c0_i32, %arg0 : i32, i32
  }
}

</mosaic_0001>

<llo_original>
// kernel: tpu_custom_call.1
$region0: #{tpu_custom_call.1}
  #allocation0 [shape = 'u32[]', space=smem, size = 0x4, offset = 0x4, fixed_abs, tag = 'smem constant byte address 0x4 - core index']
  #allocation1 [shape = 'u32[72,128]{1,0:T(1,128)}', space=vmem, size = 0x9000, scoped, tag = 'internal scratch']
  %s0 = inlined_call_operand.vmem [shape: f32[32,128], index: 0, kind: input, shape index: {}]
  %s1 = inlined_call_operand.vmem [shape: bf16[64,32], index: 1, kind: input, shape index: {}]
  %s2 = inlined_call_operand.vmem [shape: f32[64,1], index: 2, kind: input, shape index: {}]
  %s3 = inlined_call_operand.vmem [shape: f32[64,1], index: 3, kind: input, shape index: {}]
  %s4 = inlined_call_operand.vmem [shape: f32[64,27], index: 4, kind: input, shape index: {}]
  %s5 = inlined_call_operand.vmem [shape: f32[9,128], index: 5, kind: input, shape index: {}]
  %s6 = inlined_call_operand.vmem [shape: f32[2,128], index: 6, kind: input, shape index: {}]
  %s7 = inlined_call_operand.vmem [shape: f32[64,1], index: 7, kind: input, shape index: {}]
  %s8 = inlined_call_operand.vmem [shape: f32[64,1], index: 8, kind: input, shape index: {}]
  %s9 = inlined_call_operand.vmem [shape: bf16[32,64], index: 9, kind: input, shape index: {}]
  %s10 = inlined_call_operand.vmem [shape: f32[32,1], index: 10, kind: input, shape index: {}]
  %s11 = inlined_call_operand.vmem [shape: f32[32,1], index: 11, kind: input, shape index: {}]
  %s12 = inlined_call_operand.hbm [shape: f32[32,128], index: 12, kind: output, shape index: {}]
  %s13 = sld [smem:[#allocation0]]
  $region58: #{tpu_custom_call.1} parent=0
    _
  %s15 = ssub.s32 1, %s13
  %s16 = scalar_select 0, %s15, %s13
  $region1: #{tpu_custom_call.1} parent=0
    #allocation2 [shape = 'u8[16384]{0}', space=vmem, size = 0x4000, scoped, tag = 'output window, operand 0, single buffered']
    #allocation3 [shape = 's32[1]{0}', space=sflag, size = 0x4, scoped, tag = 'scoped memory for tpu_custom_call.1']
    %17 = vsyncpa [#allocation3], 0
    // Predicated region
    $region2: #{tpu_custom_call.1} parent=1 // pred_check
      _
    $region3: #{tpu_custom_call.1} parent=1 // pred_check_branch
      %19 = sbr.rel (0) target = $region5
    $region4: #{tpu_custom_call.1} parent=1 // pred_region
      _
    $region5: #{tpu_custom_call.1} parent=1 // pred_fallthru
      _
    // Predicated region
    $region6: #{tpu_custom_call.1} parent=1 // pred_check
      _
    $region7: #{tpu_custom_call.1} parent=1 // pred_check_branch
      %21 = sbr.rel (0) target = $region9
    $region8: #{tpu_custom_call.1} parent=1 // pred_region
      _
    $region9: #{tpu_custom_call.1} parent=1 // pred_fallthru
      _
    // Predicated region
    $region10: #{tpu_custom_call.1} parent=1 // pred_check
      _
    $region11: #{tpu_custom_call.1} parent=1 // pred_check_branch
      %23 = sbr.rel (0) target = $region13
    $region12: #{tpu_custom_call.1} parent=1 // pred_region
      _
    $region13: #{tpu_custom_call.1} parent=1 // pred_fallthru
      _
    // Predicated region
    $region14: #{tpu_custom_call.1} parent=1 // pred_check
      _
    $region15: #{tpu_custom_call.1} parent=1 // pred_check_branch
      %25 = sbr.rel (0) target = $region17
    $region16: #{tpu_custom_call.1} parent=1 // pred_region
      _
    $region17: #{tpu_custom_call.1} parent=1 // pred_fallthru
      _
    // Predicated region
    $region18: #{tpu_custom_call.1} parent=1 // pred_check
      _
    $region19: #{tpu_custom_call.1} parent=1 // pred_check_branch
      %27 = sbr.rel (0) target = $region21
    $region20: #{tpu_custom_call.1} parent=1 // pred_region
      _
    $region21: #{tpu_custom_call.1} parent=1 // pred_fallthru
      _
    // Predicated region
    $region22: #{tpu_custom_call.1} parent=1 // pred_check
      _
    $region23: #{tpu_custom_call.1} parent=1 // pred_check_branch
      %29 = sbr.rel (0) target = $region25
    $region24: #{tpu_custom_call.1} parent=1 // pred_region
      _
    $region25: #{tpu_custom_call.1} parent=1 // pred_fallthru
      _
    // Predicated region
    $region26: #{tpu_custom_call.1} parent=1 // pred_check
      _
    $region27: #{tpu_custom_call.1} parent=1 // pred_check_branch
      %31 = sbr.rel (0) target = $region29
    $region28: #{tpu_custom_call.1} parent=1 // pred_region
      _
    $region29: #{tpu_custom_call.1} parent=1 // pred_fallthru
      _
    // Predicated region
    $region30: #{tpu_custom_call.1} parent=1 // pred_check
      _
    $region31: #{tpu_custom_call.1} parent=1 // pred_check_branch
      %33 = sbr.rel (0) target = $region33
    $region32: #{tpu_custom_call.1} parent=1 // pred_region
      _
    $region33: #{tpu_custom_call.1} parent=1 // pred_fallthru
      _
    // Predicated region
    $region34: #{tpu_custom_call.1} parent=1 // pred_check
      _
    $region35: #{tpu_custom_call.1} parent=1 // pred_check_branch
      %35 = sbr.rel (0) target = $region37
    $region36: #{tpu_custom_call.1} parent=1 // pred_region
      _
    $region37: #{tpu_custom_call.1} parent=1 // pred_fallthru
      _
    // Predicated region
    $region38: #{tpu_custom_call.1} parent=1 // pred_check
      _
    $region39: #{tpu_custom_call.1} parent=1 // pred_check_branch
      %37 = sbr.rel (0) target = $region41
    $region40: #{tpu_custom_call.1} parent=1 // pred_region
      _
    $region41: #{tpu_custom_call.1} parent=1 // pred_fallthru
      _
    // Predicated region
    $region42: #{tpu_custom_call.1} parent=1 // pred_check
      _
    $region43: #{tpu_custom_call.1} parent=1 // pred_check_branch
      %39 = sbr.rel (0) target = $region45
    $region44: #{tpu_custom_call.1} parent=1 // pred_region
      _
    $region45: #{tpu_custom_call.1} parent=1 // pred_fallthru
      _
    // Predicated region
    $region46: #{tpu_custom_call.1} parent=1 // pred_check
      _
    $region47: #{tpu_custom_call.1} parent=1 // pred_check_branch
      %41 = sbr.rel (0) target = $region49
    $region48: #{tpu_custom_call.1} parent=1 // pred_region
      _
    $region49: #{tpu_custom_call.1} parent=1 // pred_fallthru
      _
    %v43 = vld [vmem:[%s1] sm:$0xf]
    %v44 = vld [vmem:[%s1 + $0x4] sm:$0xf]
    %v45 = vld [vmem:[%s1 + $0x8] sm:$0xf]
    %v46 = vld [vmem:[%s1 + $0xc] sm:$0xf]
    %v47 = vld [vmem:[%s1 + $0x10] sm:$0xf]
    %v48 = vld [vmem:[%s1 + $0x14] sm:$0xf]
    %v49 = vld [vmem:[%s1 + $0x18] sm:$0xf]
    %v50 = vld [vmem:[%s1 + $0x1c] sm:$0xf]
    %v51 = vld [vmem:[%s0] sm:$0xff]
    %v52 = vld [vmem:[%s0 + $0x8] sm:$0xff]
    %v53 = vld [vmem:[%s0 + $0x10] sm:$0xff]
    %v54 = vld [vmem:[%s0 + $0x18] sm:$0xff]
    %v55 = vpack.c.bf16 %v52, %v51
    %v56 = vpack.c.bf16 %v54, %v53
    %v65 = vunpack.c.l.b16 %v43
    %v66 = vunpack.c.l.b16 %v44
    %v67 = vunpack.c.l.b16 %v45
    %v68 = vunpack.c.l.b16 %v46
    %v69 = vunpack.c.l.b16 %v47
    %v70 = vunpack.c.l.b16 %v48
    %v71 = vunpack.c.l.b16 %v49
    %v72 = vunpack.c.l.b16 %v50
    %v73 = vpack.c.b16 %v66, %v65
    %v74 = vpack.c.b16 %v68, %v67
    %v75 = vpack.c.b16 %v70, %v69
    %v76 = vpack.c.b16 %v72, %v71
    %vm77 = vcmask 261120
    %v79 = vsel %vm77, %v73, 0
    %v82 = vsel %vm77, %v74, 0
    %v85 = vsel %vm77, %v75, 0
    %v88 = vsel %vm77, %v76, 0
    %90 = vmatpush.bf16.msra.mxu0 0
    %91 = vmatpush.bf16.msra.mxu0 0
    %92 = vmatpush.bf16.msra.mxu0 0
    %93 = vmatpush.bf16.msra.mxu0 0
    %94 = vmatpush.bf16.msra.mxu0 0
    %95 = vmatpush.bf16.msra.mxu0 0
    %96 = vmatpush.bf16.msra.mxu0 %v56
    %97 = vmatpush.bf16.msra.mxu0 %v55
    %98 = vmatmul.bf16.gmra.mxu0 %v79
    %v99 = vpop.f32.mrf.mxu0
    %v100 = vadd.f32 0.0, %v99
    %v101 = vpop.f32.mrf.mxu0
    %v102 = vadd.f32 0.0, %v101
    %103 = vmatmul.bf16.gmra.mxu0 %v82
    %v104 = vpop.f32.mrf.mxu0
    %v105 = vadd.f32 0.0, %v104
    %v106 = vpop.f32.mrf.mxu0
    %v107 = vadd.f32 0.0, %v106
    %108 = vmatmul.bf16.gmra.mxu0 %v85
    %v109 = vpop.f32.mrf.mxu0
    %v110 = vadd.f32 0.0, %v109
    %v111 = vpop.f32.mrf.mxu0
    %v112 = vadd.f32 0.0, %v111
    %113 = vmatmul.bf16.gmra.mxu0 %v88
    %v114 = vpop.f32.mrf.mxu0
    %v115 = vadd.f32 0.0, %v114
    %v116 = vpop.f32.mrf.mxu0
    %v117 = vadd.f32 0.0, %v116
    %118 = vdwg.mxu0
    %v119 = vld [vmem:[%s2] sm:$0xff]
    %v120 = vld [vmem:[%s2 + $0x8] sm:$0xff]
    %v121 = vld [vmem:[%s2 + $0x10] sm:$0xff]
    %v122 = vld [vmem:[%s2 + $0x18] sm:$0xff]
    %v123 = vld [vmem:[%s2 + $0x20] sm:$0xff]
    %v124 = vld [vmem:[%s2 + $0x28] sm:$0xff]
    %v125 = vld [vmem:[%s2 + $0x30] sm:$0xff]
    %v126 = vld [vmem:[%s2 + $0x38] sm:$0xff]
    %128 = vset.pattern.permute.xlu0 0
    %129 = vperm.xlu0 %128, %v119
    %v130 = vpop.permute.xlu0 %129
    %133 = vset.pattern.permute.xlu0 0
    %134 = vperm.xlu0 %133, %v120
    %v135 = vpop.permute.xlu0 %134
    %138 = vset.pattern.permute.xlu0 0
    %139 = vperm.xlu0 %138, %v121
    %v140 = vpop.permute.xlu0 %139
    %143 = vset.pattern.permute.xlu0 0
    %144 = vperm.xlu0 %143, %v122
    %v145 = vpop.permute.xlu0 %144
    %148 = vset.pattern.permute.xlu0 0
    %149 = vperm.xlu0 %148, %v123
    %v150 = vpop.permute.xlu0 %149
    %153 = vset.pattern.permute.xlu0 0
    %154 = vperm.xlu0 %153, %v124
    %v155 = vpop.permute.xlu0 %154
    %158 = vset.pattern.permute.xlu0 0
    %159 = vperm.xlu0 %158, %v125
    %v160 = vpop.permute.xlu0 %159
    %163 = vset.pattern.permute.xlu0 0
    %164 = vperm.xlu0 %163, %v126
    %v165 = vpop.permute.xlu0 %164
    %v167 = vmul.f32 %v100, %v130
    %v168 = vmul.f32 %v102, %v135
    %v169 = vmul.f32 %v105, %v140
    %v170 = vmul.f32 %v107, %v145
    %v171 = vmul.f32 %v110, %v150
    %v172 = vmul.f32 %v112, %v155
    %v173 = vmul.f32 %v115, %v160
    %v174 = vmul.f32 %v117, %v165
    %v175 = vld [vmem:[%s3] sm:$0xff]
    %v176 = vld [vmem:[%s3 + $0x8] sm:$0xff]
    %v177 = vld [vmem:[%s3 + $0x10] sm:$0xff]
    %v178 = vld [vmem:[%s3 + $0x18] sm:$0xff]
    %v179 = vld [vmem:[%s3 + $0x20] sm:$0xff]
    %v180 = vld [vmem:[%s3 + $0x28] sm:$0xff]
    %v181 = vld [vmem:[%s3 + $0x30] sm:$0xff]
    %v182 = vld [vmem:[%s3 + $0x38] sm:$0xff]
    %184 = vset.pattern.permute.xlu0 0
    %185 = vperm.xlu0 %184, %v175
    %v186 = vpop.permute.xlu0 %185
    %189 = vset.pattern.permute.xlu0 0
    %190 = vperm.xlu0 %189, %v176
    %v191 = vpop.permute.xlu0 %190
    %194 = vset.pattern.permute.xlu0 0
    %195 = vperm.xlu0 %194, %v177
    %v196 = vpop.permute.xlu0 %195
    %199 = vset.pattern.permute.xlu0 0
    %200 = vperm.xlu0 %199, %v178
    %v201 = vpop.permute.xlu0 %200
    %204 = vset.pattern.permute.xlu0 0
    %205 = vperm.xlu0 %204, %v179
    %v206 = vpop.permute.xlu0 %205
    %209 = vset.pattern.permute.xlu0 0
    %210 = vperm.xlu0 %209, %v180
    %v211 = vpop.permute.xlu0 %210
    %214 = vset.pattern.permute.xlu0 0
    %215 = vperm.xlu0 %214, %v181
    %v216 = vpop.permute.xlu0 %215
    %219 = vset.pattern.permute.xlu0 0
    %220 = vperm.xlu0 %219, %v182
    %v221 = vpop.permute.xlu0 %220
    %v223 = vadd.f32 %v167, %v186
    %v224 = vadd.f32 %v168, %v191
    %v225 = vadd.f32 %v169, %v196
    %v226 = vadd.f32 %v170, %v201
    %v227 = vadd.f32 %v171, %v206
    %v228 = vadd.f32 %v172, %v211
    %v229 = vadd.f32 %v173, %v216
    %v230 = vadd.f32 %v174, %v221
    %vm231 = vcmp.gt.f32.partialorder %v223, 0.0
    %vm232 = vcmp.gt.f32.partialorder %v224, 0.0
    %vm233 = vcmp.gt.f32.partialorder %v225, 0.0
    %vm234 = vcmp.gt.f32.partialorder %v226, 0.0
    %vm235 = vcmp.gt.f32.partialorder %v227, 0.0
    %vm236 = vcmp.gt.f32.partialorder %v228, 0.0
    %vm237 = vcmp.gt.f32.partialorder %v229, 0.0
    %vm238 = vcmp.gt.f32.partialorder %v230, 0.0
    %v239 = vmin.f32 %v223, 0.0
    %v240 = vmin.f32 %v224, 0.0
    %v241 = vmin.f32 %v225, 0.0
    %v242 = vmin.f32 %v226, 0.0
    %v243 = vmin.f32 %v227, 0.0
    %v244 = vmin.f32 %v228, 0.0
    %v245 = vmin.f32 %v229, 0.0
    %v246 = vmin.f32 %v230, 0.0
    %v247 = vmul.f32 %v239, 1.442695
    %v248 = vpow.pop %v247
    %v249 = vmul.f32 %v240, 1.442695
    %v250 = vpow.pop %v249
    %v251 = vmul.f32 %v241, 1.442695
    %v252 = vpow.pop %v251
    %v253 = vmul.f32 %v242, 1.442695
    %v254 = vpow.pop %v253
    %v255 = vmul.f32 %v243, 1.442695
    %v256 = vpow.pop %v255
    %v257 = vmul.f32 %v244, 1.442695
    %v258 = vpow.pop %v257
    %v259 = vmul.f32 %v245, 1.442695
    %v260 = vpow.pop %v259
    %v261 = vmul.f32 %v246, 1.442695
    %v262 = vpow.pop %v261
    %v263 = vsub.f32 %v248, 1.0
    %v264 = vsub.f32 %v250, 1.0
    %v265 = vsub.f32 %v252, 1.0
    %v266 = vsub.f32 %v254, 1.0
    %v267 = vsub.f32 %v256, 1.0
    %v268 = vsub.f32 %v258, 1.0
    %v269 = vsub.f32 %v260, 1.0
    %v270 = vsub.f32 %v262, 1.0
    %v271 = vsel %vm231, %v223, %v263
    %v272 = vsel %vm232, %v224, %v264
    %v273 = vsel %vm233, %v225, %v265
    %v274 = vsel %vm234, %v226, %v266
    %v275 = vsel %vm235, %v227, %v267
    %v276 = vsel %vm236, %v228, %v268
    %v277 = vsel %vm237, %v229, %v269
    %v278 = vsel %vm238, %v230, %v270
    %279 = vrot.lane.b32.xlu0 %v271, 5
    %v280 = vpop.permute.xlu0 %279
    %281 = vrot.lane.b32.xlu0 %v272, 5
    %v282 = vpop.permute.xlu0 %281
    %283 = vrot.lane.b32.xlu0 %v273, 5
    %v284 = vpop.permute.xlu0 %283
    %285 = vrot.lane.b32.xlu0 %v274, 5
    %v286 = vpop.permute.xlu0 %285
    %287 = vrot.lane.b32.xlu0 %v275, 5
    %v288 = vpop.permute.xlu0 %287
    %289 = vrot.lane.b32.xlu0 %v276, 5
    %v290 = vpop.permute.xlu0 %289
    %291 = vrot.lane.b32.xlu0 %v277, 5
    %v292 = vpop.permute.xlu0 %291
    %293 = vrot.lane.b32.xlu0 %v278, 5
    %v294 = vpop.permute.xlu0 %293
    %v295 = vld [vmem:[%s5] sm:$0x1]
    %v296 = vperm.slane %v295, 0
    %v297 = vmul.f32 %v280, %v296
    %v298 = vmul.f32 %v282, %v296
    %v299 = vmul.f32 %v284, %v296
    %v300 = vmul.f32 %v286, %v296
    %v301 = vmul.f32 %v288, %v296
    %v302 = vmul.f32 %v290, %v296
    %v303 = vmul.f32 %v292, %v296
    %v304 = vmul.f32 %v294, %v296
    %305 = vrot.lane.b32.xlu0 %v271, 4
    %v306 = vpop.permute.xlu0 %305
    %307 = vrot.lane.b32.xlu0 %v272, 4
    %v308 = vpop.permute.xlu0 %307
    %309 = vrot.lane.b32.xlu0 %v273, 4
    %v310 = vpop.permute.xlu0 %309
    %311 = vrot.lane.b32.xlu0 %v274, 4
    %v312 = vpop.permute.xlu0 %311
    %313 = vrot.lane.b32.xlu0 %v275, 4
    %v314 = vpop.permute.xlu0 %313
    %315 = vrot.lane.b32.xlu0 %v276, 4
    %v316 = vpop.permute.xlu0 %315
    %317 = vrot.lane.b32.xlu0 %v277, 4
    %v318 = vpop.permute.xlu0 %317
    %319 = vrot.lane.b32.xlu0 %v278, 4
    %v320 = vpop.permute.xlu0 %319
    %v321 = vld [vmem:[%s5 + $0x1] sm:$0x1]
    %v322 = vperm.slane %v321, 0
    %v323 = vmul.f32 %v306, %v322
    %v324 = vmul.f32 %v308, %v322
    %v325 = vmul.f32 %v310, %v322
    %v326 = vmul.f32 %v312, %v322
    %v327 = vmul.f32 %v314, %v322
    %v328 = vmul.f32 %v316, %v322
    %v329 = vmul.f32 %v318, %v322
    %v330 = vmul.f32 %v320, %v322
    %331 = vrot.lane.b32.xlu0 %v271, 3
    %v332 = vpop.permute.xlu0 %331
    %333 = vrot.lane.b32.xlu0 %v272, 3
    %v334 = vpop.permute.xlu0 %333
    %335 = vrot.lane.b32.xlu0 %v273, 3
    %v336 = vpop.permute.xlu0 %335
    %337 = vrot.lane.b32.xlu0 %v274, 3
    %v338 = vpop.permute.xlu0 %337
    %339 = vrot.lane.b32.xlu0 %v275, 3
    %v340 = vpop.permute.xlu0 %339
    %341 = vrot.lane.b32.xlu0 %v276, 3
    %v342 = vpop.permute.xlu0 %341
    %343 = vrot.lane.b32.xlu0 %v277, 3
    %v344 = vpop.permute.xlu0 %343
    %345 = vrot.lane.b32.xlu0 %v278, 3
    %v346 = vpop.permute.xlu0 %345
    %v347 = vld [vmem:[%s5 + $0x2] sm:$0x1]
    %v348 = vperm.slane %v347, 0
    %v349 = vmul.f32 %v332, %v348
    %v350 = vmul.f32 %v334, %v348
    %v351 = vmul.f32 %v336, %v348
    %v352 = vmul.f32 %v338, %v348
    %v353 = vmul.f32 %v340, %v348
    %v354 = vmul.f32 %v342, %v348
    %v355 = vmul.f32 %v344, %v348
    %v356 = vmul.f32 %v346, %v348
    %357 = vrot.lane.b32.xlu0 %v271, 1
    %v358 = vpop.permute.xlu0 %357
    %359 = vrot.lane.b32.xlu0 %v272, 1
    %v360 = vpop.permute.xlu0 %359
    %361 = vrot.lane.b32.xlu0 %v273, 1
    %v362 = vpop.permute.xlu0 %361
    %363 = vrot.lane.b32.xlu0 %v274, 1
    %v364 = vpop.permute.xlu0 %363
    %365 = vrot.lane.b32.xlu0 %v275, 1
    %v366 = vpop.permute.xlu0 %365
    %367 = vrot.lane.b32.xlu0 %v276, 1
    %v368 = vpop.permute.xlu0 %367
    %369 = vrot.lane.b32.xlu0 %v277, 1
    %v370 = vpop.permute.xlu0 %369
    %371 = vrot.lane.b32.xlu0 %v278, 1
    %v372 = vpop.permute.xlu0 %371
    %v373 = vld [vmem:[%s5 + $0x3] sm:$0x1]
    %v374 = vperm.slane %v373, 0
    %v375 = vmul.f32 %v358, %v374
    %v376 = vmul.f32 %v360, %v374
    %v377 = vmul.f32 %v362, %v374
    %v378 = vmul.f32 %v364, %v374
    %v379 = vmul.f32 %v366, %v374
    %v380 = vmul.f32 %v368, %v374
    %v381 = vmul.f32 %v370, %v374
    %v382 = vmul.f32 %v372, %v374
    %383 = vrot.lane.b32.xlu0 %v271, 127
    %v384 = vpop.permute.xlu0 %383
    %385 = vrot.lane.b32.xlu0 %v272, 127
    %v386 = vpop.permute.xlu0 %385
    %387 = vrot.lane.b32.xlu0 %v273, 127
    %v388 = vpop.permute.xlu0 %387
    %389 = vrot.lane.b32.xlu0 %v274, 127
    %v390 = vpop.permute.xlu0 %389
    %391 = vrot.lane.b32.xlu0 %v275, 127
    %v392 = vpop.permute.xlu0 %391
    %393 = vrot.lane.b32.xlu0 %v276, 127
    %v394 = vpop.permute.xlu0 %393
    %395 = vrot.lane.b32.xlu0 %v277, 127
    %v396 = vpop.permute.xlu0 %395
    %397 = vrot.lane.b32.xlu0 %v278, 127
    %v398 = vpop.permute.xlu0 %397
    %v399 = vld [vmem:[%s5 + $0x5] sm:$0x1]
    %v400 = vperm.slane %v399, 0
    %v401 = vmul.f32 %v384, %v400
    %v402 = vmul.f32 %v386, %v400
    %v403 = vmul.f32 %v388, %v400
    %v404 = vmul.f32 %v390, %v400
    %v405 = vmul.f32 %v392, %v400
    %v406 = vmul.f32 %v394, %v400
    %v407 = vmul.f32 %v396, %v400
    %v408 = vmul.f32 %v398, %v400
    %409 = vrot.lane.b32.xlu0 %v271, 125
    %v410 = vpop.permute.xlu0 %409
    %411 = vrot.lane.b32.xlu0 %v272, 125
    %v412 = vpop.permute.xlu0 %411
    %413 = vrot.lane.b32.xlu0 %v273, 125
    %v414 = vpop.permute.xlu0 %413
    %415 = vrot.lane.b32.xlu0 %v274, 125
    %v416 = vpop.permute.xlu0 %415
    %417 = vrot.lane.b32.xlu0 %v275, 125
    %v418 = vpop.permute.xlu0 %417
    %419 = vrot.lane.b32.xlu0 %v276, 125
    %v420 = vpop.permute.xlu0 %419
    %421 = vrot.lane.b32.xlu0 %v277, 125
    %v422 = vpop.permute.xlu0 %421
    %423 = vrot.lane.b32.xlu0 %v278, 125
    %v424 = vpop.permute.xlu0 %423
    %v425 = vld [vmem:[%s5 + $0x6] sm:$0x1]
    %v426 = vperm.slane %v425, 0
    %v427 = vmul.f32 %v410, %v426
    %v428 = vmul.f32 %v412, %v426
    %v429 = vmul.f32 %v414, %v426
    %v430 = vmul.f32 %v416, %v426
    %v431 = vmul.f32 %v418, %v426
    %v432 = vmul.f32 %v420, %v426
    %v433 = vmul.f32 %v422, %v426
    %v434 = vmul.f32 %v424, %v426
    %435 = vrot.lane.b32.xlu0 %v271, 124
    %v436 = vpop.permute.xlu0 %435
    %437 = vrot.lane.b32.xlu0 %v272, 124
    %v438 = vpop.permute.xlu0 %437
    %439 = vrot.lane.b32.xlu0 %v273, 124
    %v440 = vpop.permute.xlu0 %439
    %441 = vrot.lane.b32.xlu0 %v274, 124
    %v442 = vpop.permute.xlu0 %441
    %443 = vrot.lane.b32.xlu0 %v275, 124
    %v444 = vpop.permute.xlu0 %443
    %445 = vrot.lane.b32.xlu0 %v276, 124
    %v446 = vpop.permute.xlu0 %445
    %447 = vrot.lane.b32.xlu0 %v277, 124
    %v448 = vpop.permute.xlu0 %447
    %449 = vrot.lane.b32.xlu0 %v278, 124
    %v450 = vpop.permute.xlu0 %449
    %v451 = vld [vmem:[%s5 + $0x7] sm:$0x1]
    %v452 = vperm.slane %v451, 0
    %v453 = vmul.f32 %v436, %v452
    %v454 = vmul.f32 %v438, %v452
    %v455 = vmul.f32 %v440, %v452
    %v456 = vmul.f32 %v442, %v452
    %v457 = vmul.f32 %v444, %v452
    %v458 = vmul.f32 %v446, %v452
    %v459 = vmul.f32 %v448, %v452
    %v460 = vmul.f32 %v450, %v452
    %461 = vrot.lane.b32.xlu0 %v271, 123
    %v462 = vpop.permute.xlu0 %461
    %463 = vrot.lane.b32.xlu0 %v272, 123
    %v464 = vpop.permute.xlu0 %463
    %465 = vrot.lane.b32.xlu0 %v273, 123
    %v466 = vpop.permute.xlu0 %465
    %467 = vrot.lane.b32.xlu0 %v274, 123
    %v468 = vpop.permute.xlu0 %467
    %469 = vrot.lane.b32.xlu0 %v275, 123
    %v470 = vpop.permute.xlu0 %469
    %471 = vrot.lane.b32.xlu0 %v276, 123
    %v472 = vpop.permute.xlu0 %471
    %473 = vrot.lane.b32.xlu0 %v277, 123
    %v474 = vpop.permute.xlu0 %473
    %475 = vrot.lane.b32.xlu0 %v278, 123
    %v476 = vpop.permute.xlu0 %475
    %v477 = vld [vmem:[%s5 + $0x8] sm:$0x1]
    %v478 = vperm.slane %v477, 0
    %v479 = vmul.f32 %v462, %v478
    %v480 = vmul.f32 %v464, %v478
    %v481 = vmul.f32 %v466, %v478
    %v482 = vmul.f32 %v468, %v478
    %v483 = vmul.f32 %v470, %v478
    %v484 = vmul.f32 %v472, %v478
    %v485 = vmul.f32 %v474, %v478
    %v486 = vmul.f32 %v476, %v478
    %v487 = vld [vmem:[%s4] sm:$0xff]
    %v488 = vld [vmem:[%s4 + $0x8] sm:$0xff]
    %v489 = vld [vmem:[%s4 + $0x10] sm:$0xff]
    %v490 = vld [vmem:[%s4 + $0x18] sm:$0xff]
    %v491 = vld [vmem:[%s4 + $0x20] sm:$0xff]
    %v492 = vld [vmem:[%s4 + $0x28] sm:$0xff]
    %v493 = vld [vmem:[%s4 + $0x30] sm:$0xff]
    %v494 = vld [vmem:[%s4 + $0x38] sm:$0xff]
    %496 = vset.pattern.permute.xlu0 0
    %497 = vperm.xlu0 %496, %v487
    %v498 = vpop.permute.xlu0 %497
    %501 = vset.pattern.permute.xlu0 0
    %502 = vperm.xlu0 %501, %v488
    %v503 = vpop.permute.xlu0 %502
    %506 = vset.pattern.permute.xlu0 0
    %507 = vperm.xlu0 %506, %v489
    %v508 = vpop.permute.xlu0 %507
    %511 = vset.pattern.permute.xlu0 0
    %512 = vperm.xlu0 %511, %v490
    %v513 = vpop.permute.xlu0 %512
    %516 = vset.pattern.permute.xlu0 0
    %517 = vperm.xlu0 %516, %v491
    %v518 = vpop.permute.xlu0 %517
    %521 = vset.pattern.permute.xlu0 0
    %522 = vperm.xlu0 %521, %v492
    %v523 = vpop.permute.xlu0 %522
    %526 = vset.pattern.permute.xlu0 0
    %527 = vperm.xlu0 %526, %v493
    %v528 = vpop.permute.xlu0 %527
    %531 = vset.pattern.permute.xlu0 0
    %532 = vperm.xlu0 %531, %v494
    %v533 = vpop.permute.xlu0 %532
    %v535 = vmul.f32 %v498, %v297
    %v536 = vmul.f32 %v503, %v298
    %v537 = vmul.f32 %v508, %v299
    %v538 = vmul.f32 %v513, %v300
    %v539 = vmul.f32 %v518, %v301
    %v540 = vmul.f32 %v523, %v302
    %v541 = vmul.f32 %v528, %v303
    %v542 = vmul.f32 %v533, %v304
    %543 = vset.pattern.permute.xlu0 1
    %544 = vperm.xlu0 %543, %v487
    %v545 = vpop.permute.xlu0 %544
    %547 = vset.pattern.permute.xlu0 1
    %548 = vperm.xlu0 %547, %v488
    %v549 = vpop.permute.xlu0 %548
    %551 = vset.pattern.permute.xlu0 1
    %552 = vperm.xlu0 %551, %v489
    %v553 = vpop.permute.xlu0 %552
    %555 = vset.pattern.permute.xlu0 1
    %556 = vperm.xlu0 %555, %v490
    %v557 = vpop.permute.xlu0 %556
    %559 = vset.pattern.permute.xlu0 1
    %560 = vperm.xlu0 %559, %v491
    %v561 = vpop.permute.xlu0 %560
    %563 = vset.pattern.permute.xlu0 1
    %564 = vperm.xlu0 %563, %v492
    %v565 = vpop.permute.xlu0 %564
    %567 = vset.pattern.permute.xlu0 1
    %568 = vperm.xlu0 %567, %v493
    %v569 = vpop.permute.xlu0 %568
    %571 = vset.pattern.permute.xlu0 1
    %572 = vperm.xlu0 %571, %v494
    %v573 = vpop.permute.xlu0 %572
    %v575 = vmul.f32 %v545, %v323
    %v576 = vmul.f32 %v549, %v324
    %v577 = vmul.f32 %v553, %v325
    %v578 = vmul.f32 %v557, %v326
    %v579 = vmul.f32 %v561, %v327
    %v580 = vmul.f32 %v565, %v328
    %v581 = vmul.f32 %v569, %v329
    %v582 = vmul.f32 %v573, %v330
    %583 = vset.pattern.permute.xlu0 2
    %584 = vperm.xlu0 %583, %v487
    %v585 = vpop.permute.xlu0 %584
    %587 = vset.pattern.permute.xlu0 2
    %588 = vperm.xlu0 %587, %v488
    %v589 = vpop.permute.xlu0 %588
    %591 = vset.pattern.permute.xlu0 2
    %592 = vperm.xlu0 %591, %v489
    %v593 = vpop.permute.xlu0 %592
    %595 = vset.pattern.permute.xlu0 2
    %596 = vperm.xlu0 %595, %v490
    %v597 = vpop.permute.xlu0 %596
    %599 = vset.pattern.permute.xlu0 2
    %600 = vperm.xlu0 %599, %v491
    %v601 = vpop.permute.xlu0 %600
    %603 = vset.pattern.permute.xlu0 2
    %604 = vperm.xlu0 %603, %v492
    %v605 = vpop.permute.xlu0 %604
    %607 = vset.pattern.permute.xlu0 2
    %608 = vperm.xlu0 %607, %v493
    %v609 = vpop.permute.xlu0 %608
    %611 = vset.pattern.permute.xlu0 2
    %612 = vperm.xlu0 %611, %v494
    %v613 = vpop.permute.xlu0 %612
    %v615 = vmul.f32 %v585, %v349
    %v616 = vmul.f32 %v589, %v350
    %v617 = vmul.f32 %v593, %v351
    %v618 = vmul.f32 %v597, %v352
    %v619 = vmul.f32 %v601, %v353
    %v620 = vmul.f32 %v605, %v354
    %v621 = vmul.f32 %v609, %v355
    %v622 = vmul.f32 %v613, %v356
    %623 = vset.pattern.permute.xlu0 3
    %624 = vperm.xlu0 %623, %v487
    %v625 = vpop.permute.xlu0 %624
    %627 = vset.pattern.permute.xlu0 3
    %628 = vperm.xlu0 %627, %v488
    %v629 = vpop.permute.xlu0 %628
    %631 = vset.pattern.permute.xlu0 3
    %632 = vperm.xlu0 %631, %v489
    %v633 = vpop.permute.xlu0 %632
    %635 = vset.pattern.permute.xlu0 3
    %636 = vperm.xlu0 %635, %v490
    %v637 = vpop.permute.xlu0 %636
    %639 = vset.pattern.permute.xlu0 3
    %640 = vperm.xlu0 %639, %v491
    %v641 = vpop.permute.xlu0 %640
    %643 = vset.pattern.permute.xlu0 3
    %644 = vperm.xlu0 %643, %v492
    %v645 = vpop.permute.xlu0 %644
    %647 = vset.pattern.permute.xlu0 3
    %648 = vperm.xlu0 %647, %v493
    %v649 = vpop.permute.xlu0 %648
    %651 = vset.pattern.permute.xlu0 3
    %652 = vperm.xlu0 %651, %v494
    %v653 = vpop.permute.xlu0 %652
    %v655 = vmul.f32 %v625, %v375
    %v656 = vmul.f32 %v629, %v376
    %v657 = vmul.f32 %v633, %v377
    %v658 = vmul.f32 %v637, %v378
    %v659 = vmul.f32 %v641, %v379
    %v660 = vmul.f32 %v645, %v380
    %v661 = vmul.f32 %v649, %v381
    %v662 = vmul.f32 %v653, %v382
    %663 = vset.pattern.permute.xlu0 4
    %664 = vperm.xlu0 %663, %v487
    %v665 = vpop.permute.xlu0 %664
    %667 = vset.pattern.permute.xlu0 4
    %668 = vperm.xlu0 %667, %v488
    %v669 = vpop.permute.xlu0 %668
    %671 = vset.pattern.permute.xlu0 4
    %672 = vperm.xlu0 %671, %v489
    %v673 = vpop.permute.xlu0 %672
    %675 = vset.pattern.permute.xlu0 4
    %676 = vperm.xlu0 %675, %v490
    %v677 = vpop.permute.xlu0 %676
    %679 = vset.pattern.permute.xlu0 4
    %680 = vperm.xlu0 %679, %v491
    %v681 = vpop.permute.xlu0 %680
    %683 = vset.pattern.permute.xlu0 4
    %684 = vperm.xlu0 %683, %v492
    %v685 = vpop.permute.xlu0 %684
    %687 = vset.pattern.permute.xlu0 4
    %688 = vperm.xlu0 %687, %v493
    %v689 = vpop.permute.xlu0 %688
    %691 = vset.pattern.permute.xlu0 4
    %692 = vperm.xlu0 %691, %v494
    %v693 = vpop.permute.xlu0 %692
    %v695 = vmul.f32 %v665, %v271
    %v696 = vmul.f32 %v669, %v272
    %v697 = vmul.f32 %v673, %v273
    %v698 = vmul.f32 %v677, %v274
    %v699 = vmul.f32 %v681, %v275
    %v700 = vmul.f32 %v685, %v276
    %v701 = vmul.f32 %v689, %v277
    %v702 = vmul.f32 %v693, %v278
    %703 = vset.pattern.permute.xlu0 5
    %704 = vperm.xlu0 %703, %v487
    %v705 = vpop.permute.xlu0 %704
    %707 = vset.pattern.permute.xlu0 5
    %708 = vperm.xlu0 %707, %v488
    %v709 = vpop.permute.xlu0 %708
    %711 = vset.pattern.permute.xlu0 5
    %712 = vperm.xlu0 %711, %v489
    %v713 = vpop.permute.xlu0 %712
    %715 = vset.pattern.permute.xlu0 5
    %716 = vperm.xlu0 %715, %v490
    %v717 = vpop.permute.xlu0 %716
    %719 = vset.pattern.permute.xlu0 5
    %720 = vperm.xlu0 %719, %v491
    %v721 = vpop.permute.xlu0 %720
    %723 = vset.pattern.permute.xlu0 5
    %724 = vperm.xlu0 %723, %v492
    %v725 = vpop.permute.xlu0 %724
    %727 = vset.pattern.permute.xlu0 5
    %728 = vperm.xlu0 %727, %v493
    %v729 = vpop.permute.xlu0 %728
    %731 = vset.pattern.permute.xlu0 5
    %732 = vperm.xlu0 %731, %v494
    %v733 = vpop.permute.xlu0 %732
    %v735 = vmul.f32 %v705, %v401
    %v736 = vmul.f32 %v709, %v402
    %v737 = vmul.f32 %v713, %v403
    %v738 = vmul.f32 %v717, %v404
    %v739 = vmul.f32 %v721, %v405
    %v740 = vmul.f32 %v725, %v406
    %v741 = vmul.f32 %v729, %v407
    %v742 = vmul.f32 %v733, %v408
    %743 = vset.pattern.permute.xlu0 6
    %744 = vperm.xlu0 %743, %v487
    %v745 = vpop.permute.xlu0 %744
    %747 = vset.pattern.permute.xlu0 6
    %748 = vperm.xlu0 %747, %v488
    %v749 = vpop.permute.xlu0 %748
    %751 = vset.pattern.permute.xlu0 6
    %752 = vperm.xlu0 %751, %v489
    %v753 = vpop.permute.xlu0 %752
    %755 = vset.pattern.permute.xlu0 6
    %756 = vperm.xlu0 %755, %v490
    %v757 = vpop.permute.xlu0 %756
    %759 = vset.pattern.permute.xlu0 6
    %760 = vperm.xlu0 %759, %v491
    %v761 = vpop.permute.xlu0 %760
    %763 = vset.pattern.permute.xlu0 6
    %764 = vperm.xlu0 %763, %v492
    %v765 = vpop.permute.xlu0 %764
    %767 = vset.pattern.permute.xlu0 6
    %768 = vperm.xlu0 %767, %v493
    %v769 = vpop.permute.xlu0 %768
    %771 = vset.pattern.permute.xlu0 6
    %772 = vperm.xlu0 %771, %v494
    %v773 = vpop.permute.xlu0 %772
    %v775 = vmul.f32 %v745, %v427
    %v776 = vmul.f32 %v749, %v428
    %v777 = vmul.f32 %v753, %v429
    %v778 = vmul.f32 %v757, %v430
    %v779 = vmul.f32 %v761, %v431
    %v780 = vmul.f32 %v765, %v432
    %v781 = vmul.f32 %v769, %v433
    %v782 = vmul.f32 %v773, %v434
    %783 = vset.pattern.permute.xlu0 7
    %784 = vperm.xlu0 %783, %v487
    %v785 = vpop.permute.xlu0 %784
    %787 = vset.pattern.permute.xlu0 7
    %788 = vperm.xlu0 %787, %v488
    %v789 = vpop.permute.xlu0 %788
    %791 = vset.pattern.permute.xlu0 7
    %792 = vperm.xlu0 %791, %v489
    %v793 = vpop.permute.xlu0 %792
    %795 = vset.pattern.permute.xlu0 7
    %796 = vperm.xlu0 %795, %v490
    %v797 = vpop.permute.xlu0 %796
    %799 = vset.pattern.permute.xlu0 7
    %800 = vperm.xlu0 %799, %v491
    %v801 = vpop.permute.xlu0 %800
    %803 = vset.pattern.permute.xlu0 7
    %804 = vperm.xlu0 %803, %v492
    %v805 = vpop.permute.xlu0 %804
    %807 = vset.pattern.permute.xlu0 7
    %808 = vperm.xlu0 %807, %v493
    %v809 = vpop.permute.xlu0 %808
    %811 = vset.pattern.permute.xlu0 7
    %812 = vperm.xlu0 %811, %v494
    %v813 = vpop.permute.xlu0 %812
    %v815 = vmul.f32 %v785, %v453
    %v816 = vmul.f32 %v789, %v454
    %v817 = vmul.f32 %v793, %v455
    %v818 = vmul.f32 %v797, %v456
    %v819 = vmul.f32 %v801, %v457
    %v820 = vmul.f32 %v805, %v458
    %v821 = vmul.f32 %v809, %v459
    %v822 = vmul.f32 %v813, %v460
    %823 = vset.pattern.permute.xlu0 8
    %824 = vperm.xlu0 %823, %v487
    %v825 = vpop.permute.xlu0 %824
    %827 = vset.pattern.permute.xlu0 8
    %828 = vperm.xlu0 %827, %v488
    %v829 = vpop.permute.xlu0 %828
    %831 = vset.pattern.permute.xlu0 8
    %832 = vperm.xlu0 %831, %v489
    %v833 = vpop.permute.xlu0 %832
    %835 = vset.pattern.permute.xlu0 8
    %836 = vperm.xlu0 %835, %v490
    %v837 = vpop.permute.xlu0 %836
    %839 = vset.pattern.permute.xlu0 8
    %840 = vperm.xlu0 %839, %v491
    %v841 = vpop.permute.xlu0 %840
    %843 = vset.pattern.permute.xlu0 8
    %844 = vperm.xlu0 %843, %v492
    %v845 = vpop.permute.xlu0 %844
    %847 = vset.pattern.permute.xlu0 8
    %848 = vperm.xlu0 %847, %v493
    %v849 = vpop.permute.xlu0 %848
    %851 = vset.pattern.permute.xlu0 8
    %852 = vperm.xlu0 %851, %v494
    %v853 = vpop.permute.xlu0 %852
    %v855 = vmul.f32 %v825, %v479
    %v856 = vmul.f32 %v829, %v480
    %v857 = vmul.f32 %v833, %v481
    %v858 = vmul.f32 %v837, %v482
    %v859 = vmul.f32 %v841, %v483
    %v860 = vmul.f32 %v845, %v484
    %v861 = vmul.f32 %v849, %v485
    %v862 = vmul.f32 %v853, %v486
    %v863 = vadd.f32 %v535, %v575
    %v864 = vadd.f32 %v536, %v576
    %v865 = vadd.f32 %v537, %v577
    %v866 = vadd.f32 %v538, %v578
    %v867 = vadd.f32 %v539, %v579
    %v868 = vadd.f32 %v540, %v580
    %v869 = vadd.f32 %v541, %v581
    %v870 = vadd.f32 %v542, %v582
    %v871 = vadd.f32 %v615, %v655
    %v872 = vadd.f32 %v616, %v656
    %v873 = vadd.f32 %v617, %v657
    %v874 = vadd.f32 %v618, %v658
    %v875 = vadd.f32 %v619, %v659
    %v876 = vadd.f32 %v620, %v660
    %v877 = vadd.f32 %v621, %v661
    %v878 = vadd.f32 %v622, %v662
    %v879 = vadd.f32 %v695, %v735
    %v880 = vadd.f32 %v696, %v736
    %v881 = vadd.f32 %v697, %v737
    %v882 = vadd.f32 %v698, %v738
    %v883 = vadd.f32 %v699, %v739
    %v884 = vadd.f32 %v700, %v740
    %v885 = vadd.f32 %v701, %v741
    %v886 = vadd.f32 %v702, %v742
    %v887 = vadd.f32 %v775, %v815
    %v888 = vadd.f32 %v776, %v816
    %v889 = vadd.f32 %v777, %v817
    %v890 = vadd.f32 %v778, %v818
    %v891 = vadd.f32 %v779, %v819
    %v892 = vadd.f32 %v780, %v820
    %v893 = vadd.f32 %v781, %v821
    %v894 = vadd.f32 %v782, %v822
    %v895 = vadd.f32 %v863, %v871
    %v896 = vadd.f32 %v864, %v872
    %v897 = vadd.f32 %v865, %v873
    %v898 = vadd.f32 %v866, %v874
    %v899 = vadd.f32 %v867, %v875
    %v900 = vadd.f32 %v868, %v876
    %v901 = vadd.f32 %v869, %v877
    %v902 = vadd.f32 %v870, %v878
    %v903 = vadd.f32 %v879, %v887
    %v904 = vadd.f32 %v880, %v888
    %v905 = vadd.f32 %v881, %v889
    %v906 = vadd.f32 %v882, %v890
    %v907 = vadd.f32 %v883, %v891
    %v908 = vadd.f32 %v884, %v892
    %v909 = vadd.f32 %v885, %v893
    %v910 = vadd.f32 %v886, %v894
    %v911 = vadd.f32 %v895, %v903
    %v912 = vadd.f32 %v896, %v904
    %v913 = vadd.f32 %v897, %v905
    %v914 = vadd.f32 %v898, %v906
    %v915 = vadd.f32 %v899, %v907
    %v916 = vadd.f32 %v900, %v908
    %v917 = vadd.f32 %v901, %v909
    %v918 = vadd.f32 %v902, %v910
    %v919 = vadd.f32 %v911, %v855
    %v920 = vadd.f32 %v912, %v856
    %v921 = vadd.f32 %v913, %v857
    %v922 = vadd.f32 %v914, %v858
    %v923 = vadd.f32 %v915, %v859
    %v924 = vadd.f32 %v916, %v860
    %v925 = vadd.f32 %v917, %v861
    %v926 = vadd.f32 %v918, %v862
    %927 = vset.pattern.permute.xlu0 9
    %928 = vperm.xlu0 %927, %v487
    %v929 = vpop.permute.xlu0 %928
    %931 = vset.pattern.permute.xlu0 9
    %932 = vperm.xlu0 %931, %v488
    %v933 = vpop.permute.xlu0 %932
    %935 = vset.pattern.permute.xlu0 9
    %936 = vperm.xlu0 %935, %v489
    %v937 = vpop.permute.xlu0 %936
    %939 = vset.pattern.permute.xlu0 9
    %940 = vperm.xlu0 %939, %v490
    %v941 = vpop.permute.xlu0 %940
    %943 = vset.pattern.permute.xlu0 9
    %944 = vperm.xlu0 %943, %v491
    %v945 = vpop.permute.xlu0 %944
    %947 = vset.pattern.permute.xlu0 9
    %948 = vperm.xlu0 %947, %v492
    %v949 = vpop.permute.xlu0 %948
    %951 = vset.pattern.permute.xlu0 9
    %952 = vperm.xlu0 %951, %v493
    %v953 = vpop.permute.xlu0 %952
    %955 = vset.pattern.permute.xlu0 9
    %956 = vperm.xlu0 %955, %v494
    %v957 = vpop.permute.xlu0 %956
    %v959 = vmul.f32 %v929, %v297
    %v960 = vmul.f32 %v933, %v298
    %v961 = vmul.f32 %v937, %v299
    %v962 = vmul.f32 %v941, %v300
    %v963 = vmul.f32 %v945, %v301
    %v964 = vmul.f32 %v949, %v302
    %v965 = vmul.f32 %v953, %v303
    %v966 = vmul.f32 %v957, %v304
    %967 = vset.pattern.permute.xlu0 10
    %968 = vperm.xlu0 %967, %v487
    %v969 = vpop.permute.xlu0 %968
    %971 = vset.pattern.permute.xlu0 10
    %972 = vperm.xlu0 %971, %v488
    %v973 = vpop.permute.xlu0 %972
    %975 = vset.pattern.permute.xlu0 10
    %976 = vperm.xlu0 %975, %v489
    %v977 = vpop.permute.xlu0 %976
    %979 = vset.pattern.permute.xlu0 10
    %980 = vperm.xlu0 %979, %v490
    %v981 = vpop.permute.xlu0 %980
    %983 = vset.pattern.permute.xlu0 10
    %984 = vperm.xlu0 %983, %v491
    %v985 = vpop.permute.xlu0 %984
    %987 = vset.pattern.permute.xlu0 10
    %988 = vperm.xlu0 %987, %v492
    %v989 = vpop.permute.xlu0 %988
    %991 = vset.pattern.permute.xlu0 10
    %992 = vperm.xlu0 %991, %v493
    %v993 = vpop.permute.xlu0 %992
    %995 = vset.pattern.permute.xlu0 10
    %996 = vperm.xlu0 %995, %v494
    %v997 = vpop.permute.xlu0 %996
    %v999 = vmul.f32 %v969, %v323
    %v1000 = vmul.f32 %v973, %v324
    %v1001 = vmul.f32 %v977, %v325
    %v1002 = vmul.f32 %v981, %v326
    %v1003 = vmul.f32 %v985, %v327
    %v1004 = vmul.f32 %v989, %v328
    %v1005 = vmul.f32 %v993, %v329
    %v1006 = vmul.f32 %v997, %v330
    %1007 = vset.pattern.permute.xlu0 11
    %1008 = vperm.xlu0 %1007, %v487
    %v1009 = vpop.permute.xlu0 %1008
    %1011 = vset.pattern.permute.xlu0 11
    %1012 = vperm.xlu0 %1011, %v488
    %v1013 = vpop.permute.xlu0 %1012
    %1015 = vset.pattern.permute.xlu0 11
    %1016 = vperm.xlu0 %1015, %v489
    %v1017 = vpop.permute.xlu0 %1016
    %1019 = vset.pattern.permute.xlu0 11
    %1020 = vperm.xlu0 %1019, %v490
    %v1021 = vpop.permute.xlu0 %1020
    %1023 = vset.pattern.permute.xlu0 11
    %1024 = vperm.xlu0 %1023, %v491
    %v1025 = vpop.permute.xlu0 %1024
    %1027 = vset.pattern.permute.xlu0 11
    %1028 = vperm.xlu0 %1027, %v492
    %v1029 = vpop.permute.xlu0 %1028
    %1031 = vset.pattern.permute.xlu0 11
    %1032 = vperm.xlu0 %1031, %v493
    %v1033 = vpop.permute.xlu0 %1032
    %1035 = vset.pattern.permute.xlu0 11
    %1036 = vperm.xlu0 %1035, %v494
    %v1037 = vpop.permute.xlu0 %1036
    %v1039 = vmul.f32 %v1009, %v349
    %v1040 = vmul.f32 %v1013, %v350
    %v1041 = vmul.f32 %v1017, %v351
    %v1042 = vmul.f32 %v1021, %v352
    %v1043 = vmul.f32 %v1025, %v353
    %v1044 = vmul.f32 %v1029, %v354
    %v1045 = vmul.f32 %v1033, %v355
    %v1046 = vmul.f32 %v1037, %v356
    %1047 = vset.pattern.permute.xlu0 12
    %1048 = vperm.xlu0 %1047, %v487
    %v1049 = vpop.permute.xlu0 %1048
    %1051 = vset.pattern.permute.xlu0 12
    %1052 = vperm.xlu0 %1051, %v488
    %v1053 = vpop.permute.xlu0 %1052
    %1055 = vset.pattern.permute.xlu0 12
    %1056 = vperm.xlu0 %1055, %v489
    %v1057 = vpop.permute.xlu0 %1056
    %1059 = vset.pattern.permute.xlu0 12
    %1060 = vperm.xlu0 %1059, %v490
    %v1061 = vpop.permute.xlu0 %1060
    %1063 = vset.pattern.permute.xlu0 12
    %1064 = vperm.xlu0 %1063, %v491
    %v1065 = vpop.permute.xlu0 %1064
    %1067 = vset.pattern.permute.xlu0 12
    %1068 = vperm.xlu0 %1067, %v492
    %v1069 = vpop.permute.xlu0 %1068
    %1071 = vset.pattern.permute.xlu0 12
    %1072 = vperm.xlu0 %1071, %v493
    %v1073 = vpop.permute.xlu0 %1072
    %1075 = vset.pattern.permute.xlu0 12
    %1076 = vperm.xlu0 %1075, %v494
    %v1077 = vpop.permute.xlu0 %1076
    %v1079 = vmul.f32 %v1049, %v375
    %v1080 = vmul.f32 %v1053, %v376
    %v1081 = vmul.f32 %v1057, %v377
    %v1082 = vmul.f32 %v1061, %v378
    %v1083 = vmul.f32 %v1065, %v379
    %v1084 = vmul.f32 %v1069, %v380
    %v1085 = vmul.f32 %v1073, %v381
    %v1086 = vmul.f32 %v1077, %v382
    %1087 = vset.pattern.permute.xlu0 13
    %1088 = vperm.xlu0 %1087, %v487
    %v1089 = vpop.permute.xlu0 %1088
    %1091 = vset.pattern.permute.xlu0 13
    %1092 = vperm.xlu0 %1091, %v488
    %v1093 = vpop.permute.xlu0 %1092
    %1095 = vset.pattern.permute.xlu0 13
    %1096 = vperm.xlu0 %1095, %v489
    %v1097 = vpop.permute.xlu0 %1096
    %1099 = vset.pattern.permute.xlu0 13
    %1100 = vperm.xlu0 %1099, %v490
    %v1101 = vpop.permute.xlu0 %1100
    %1103 = vset.pattern.permute.xlu0 13
    %1104 = vperm.xlu0 %1103, %v491
    %v1105 = vpop.permute.xlu0 %1104
    %1107 = vset.pattern.permute.xlu0 13
    %1108 = vperm.xlu0 %1107, %v492
    %v1109 = vpop.permute.xlu0 %1108
    %1111 = vset.pattern.permute.xlu0 13
    %1112 = vperm.xlu0 %1111, %v493
    %v1113 = vpop.permute.xlu0 %1112
    %1115 = vset.pattern.permute.xlu0 13
    %1116 = vperm.xlu0 %1115, %v494
    %v1117 = vpop.permute.xlu0 %1116
    %v1119 = vmul.f32 %v1089, %v271
    %v1120 = vmul.f32 %v1093, %v272
    %v1121 = vmul.f32 %v1097, %v273
    %v1122 = vmul.f32 %v1101, %v274
    %v1123 = vmul.f32 %v1105, %v275
    %v1124 = vmul.f32 %v1109, %v276
    %v1125 = vmul.f32 %v1113, %v277
    %v1126 = vmul.f32 %v1117, %v278
    %1127 = vset.pattern.permute.xlu0 14
    %1128 = vperm.xlu0 %1127, %v487
    %v1129 = vpop.permute.xlu0 %1128
    %1131 = vset.pattern.permute.xlu0 14
    %1132 = vperm.xlu0 %1131, %v488
    %v1133 = vpop.permute.xlu0 %1132
    %1135 = vset.pattern.permute.xlu0 14
    %1136 = vperm.xlu0 %1135, %v489
    %v1137 = vpop.permute.xlu0 %1136
    %1139 = vset.pattern.permute.xlu0 14
    %1140 = vperm.xlu0 %1139, %v490
    %v1141 = vpop.permute.xlu0 %1140
    %1143 = vset.pattern.permute.xlu0 14
    %1144 = vperm.xlu0 %1143, %v491
    %v1145 = vpop.permute.xlu0 %1144
    %1147 = vset.pattern.permute.xlu0 14
    %1148 = vperm.xlu0 %1147, %v492
    %v1149 = vpop.permute.xlu0 %1148
    %1151 = vset.pattern.permute.xlu0 14
    %1152 = vperm.xlu0 %1151, %v493
    %v1153 = vpop.permute.xlu0 %1152
    %1155 = vset.pattern.permute.xlu0 14
    %1156 = vperm.xlu0 %1155, %v494
    %v1157 = vpop.permute.xlu0 %1156
    %v1159 = vmul.f32 %v1129, %v401
    %v1160 = vmul.f32 %v1133, %v402
    %v1161 = vmul.f32 %v1137, %v403
    %v1162 = vmul.f32 %v1141, %v404
    %v1163 = vmul.f32 %v1145, %v405
    %v1164 = vmul.f32 %v1149, %v406
    %v1165 = vmul.f32 %v1153, %v407
    %v1166 = vmul.f32 %v1157, %v408
    %1167 = vset.pattern.permute.xlu0 15
    %1168 = vperm.xlu0 %1167, %v487
    %v1169 = vpop.permute.xlu0 %1168
    %1171 = vset.pattern.permute.xlu0 15
    %1172 = vperm.xlu0 %1171, %v488
    %v1173 = vpop.permute.xlu0 %1172
    %1175 = vset.pattern.permute.xlu0 15
    %1176 = vperm.xlu0 %1175, %v489
    %v1177 = vpop.permute.xlu0 %1176
    %1179 = vset.pattern.permute.xlu0 15
    %1180 = vperm.xlu0 %1179, %v490
    %v1181 = vpop.permute.xlu0 %1180
    %1183 = vset.pattern.permute.xlu0 15
    %1184 = vperm.xlu0 %1183, %v491
    %v1185 = vpop.permute.xlu0 %1184
    %1187 = vset.pattern.permute.xlu0 15
    %1188 = vperm.xlu0 %1187, %v492
    %v1189 = vpop.permute.xlu0 %1188
    %1191 = vset.pattern.permute.xlu0 15
    %1192 = vperm.xlu0 %1191, %v493
    %v1193 = vpop.permute.xlu0 %1192
    %1195 = vset.pattern.permute.xlu0 15
    %1196 = vperm.xlu0 %1195, %v494
    %v1197 = vpop.permute.xlu0 %1196
    %v1199 = vmul.f32 %v1169, %v427
    %v1200 = vmul.f32 %v1173, %v428
    %v1201 = vmul.f32 %v1177, %v429
    %v1202 = vmul.f32 %v1181, %v430
    %v1203 = vmul.f32 %v1185, %v431
    %v1204 = vmul.f32 %v1189, %v432
    %v1205 = vmul.f32 %v1193, %v433
    %v1206 = vmul.f32 %v1197, %v434
    %1207 = vset.pattern.permute.xlu0 16
    %1208 = vperm.xlu0 %1207, %v487
    %v1209 = vpop.permute.xlu0 %1208
    %1211 = vset.pattern.permute.xlu0 16
    %1212 = vperm.xlu0 %1211, %v488
    %v1213 = vpop.permute.xlu0 %1212
    %1215 = vset.pattern.permute.xlu0 16
    %1216 = vperm.xlu0 %1215, %v489
    %v1217 = vpop.permute.xlu0 %1216
    %1219 = vset.pattern.permute.xlu0 16
    %1220 = vperm.xlu0 %1219, %v490
    %v1221 = vpop.permute.xlu0 %1220
    %1223 = vset.pattern.permute.xlu0 16
    %1224 = vperm.xlu0 %1223, %v491
    %v1225 = vpop.permute.xlu0 %1224
    %1227 = vset.pattern.permute.xlu0 16
    %1228 = vperm.xlu0 %1227, %v492
    %v1229 = vpop.permute.xlu0 %1228
    %1231 = vset.pattern.permute.xlu0 16
    %1232 = vperm.xlu0 %1231, %v493
    %v1233 = vpop.permute.xlu0 %1232
    %1235 = vset.pattern.permute.xlu0 16
    %1236 = vperm.xlu0 %1235, %v494
    %v1237 = vpop.permute.xlu0 %1236
    %v1239 = vmul.f32 %v1209, %v453
    %v1240 = vmul.f32 %v1213, %v454
    %v1241 = vmul.f32 %v1217, %v455
    %v1242 = vmul.f32 %v1221, %v456
    %v1243 = vmul.f32 %v1225, %v457
    %v1244 = vmul.f32 %v1229, %v458
    %v1245 = vmul.f32 %v1233, %v459
    %v1246 = vmul.f32 %v1237, %v460
    %1247 = vset.pattern.permute.xlu0 17
    %1248 = vperm.xlu0 %1247, %v487
    %v1249 = vpop.permute.xlu0 %1248
    %1251 = vset.pattern.permute.xlu0 17
    %1252 = vperm.xlu0 %1251, %v488
    %v1253 = vpop.permute.xlu0 %1252
    %1255 = vset.pattern.permute.xlu0 17
    %1256 = vperm.xlu0 %1255, %v489
    %v1257 = vpop.permute.xlu0 %1256
    %1259 = vset.pattern.permute.xlu0 17
    %1260 = vperm.xlu0 %1259, %v490
    %v1261 = vpop.permute.xlu0 %1260
    %1263 = vset.pattern.permute.xlu0 17
    %1264 = vperm.xlu0 %1263, %v491
    %v1265 = vpop.permute.xlu0 %1264
    %1267 = vset.pattern.permute.xlu0 17
    %1268 = vperm.xlu0 %1267, %v492
    %v1269 = vpop.permute.xlu0 %1268
    %1271 = vset.pattern.permute.xlu0 17
    %1272 = vperm.xlu0 %1271, %v493
    %v1273 = vpop.permute.xlu0 %1272
    %1275 = vset.pattern.permute.xlu0 17
    %1276 = vperm.xlu0 %1275, %v494
    %v1277 = vpop.permute.xlu0 %1276
    %v1279 = vmul.f32 %v1249, %v479
    %v1280 = vmul.f32 %v1253, %v480
    %v1281 = vmul.f32 %v1257, %v481
    %v1282 = vmul.f32 %v1261, %v482
    %v1283 = vmul.f32 %v1265, %v483
    %v1284 = vmul.f32 %v1269, %v484
    %v1285 = vmul.f32 %v1273, %v485
    %v1286 = vmul.f32 %v1277, %v486
    %v1287 = vadd.f32 %v959, %v999
    %v1288 = vadd.f32 %v960, %v1000
    %v1289 = vadd.f32 %v961, %v1001
    %v1290 = vadd.f32 %v962, %v1002
    %v1291 = vadd.f32 %v963, %v1003
    %v1292 = vadd.f32 %v964, %v1004
    %v1293 = vadd.f32 %v965, %v1005
    %v1294 = vadd.f32 %v966, %v1006
    %v1295 = vadd.f32 %v1039, %v1079
    %v1296 = vadd.f32 %v1040, %v1080
    %v1297 = vadd.f32 %v1041, %v1081
    %v1298 = vadd.f32 %v1042, %v1082
    %v1299 = vadd.f32 %v1043, %v1083
    %v1300 = vadd.f32 %v1044, %v1084
    %v1301 = vadd.f32 %v1045, %v1085
    %v1302 = vadd.f32 %v1046, %v1086
    %v1303 = vadd.f32 %v1119, %v1159
    %v1304 = vadd.f32 %v1120, %v1160
    %v1305 = vadd.f32 %v1121, %v1161
    %v1306 = vadd.f32 %v1122, %v1162
    %v1307 = vadd.f32 %v1123, %v1163
    %v1308 = vadd.f32 %v1124, %v1164
    %v1309 = vadd.f32 %v1125, %v1165
    %v1310 = vadd.f32 %v1126, %v1166
    %v1311 = vadd.f32 %v1199, %v1239
    %v1312 = vadd.f32 %v1200, %v1240
    %v1313 = vadd.f32 %v1201, %v1241
    %v1314 = vadd.f32 %v1202, %v1242
    %v1315 = vadd.f32 %v1203, %v1243
    %v1316 = vadd.f32 %v1204, %v1244
    %v1317 = vadd.f32 %v1205, %v1245
    %v1318 = vadd.f32 %v1206, %v1246
    %v1319 = vadd.f32 %v1287, %v1295
    %v1320 = vadd.f32 %v1288, %v1296
    %v1321 = vadd.f32 %v1289, %v1297
    %v1322 = vadd.f32 %v1290, %v1298
    %v1323 = vadd.f32 %v1291, %v1299
    %v1324 = vadd.f32 %v1292, %v1300
    %v1325 = vadd.f32 %v1293, %v1301
    %v1326 = vadd.f32 %v1294, %v1302
    %v1327 = vadd.f32 %v1303, %v1311
    %v1328 = vadd.f32 %v1304, %v1312
    %v1329 = vadd.f32 %v1305, %v1313
    %v1330 = vadd.f32 %v1306, %v1314
    %v1331 = vadd.f32 %v1307, %v1315
    %v1332 = vadd.f32 %v1308, %v1316
    %v1333 = vadd.f32 %v1309, %v1317
    %v1334 = vadd.f32 %v1310, %v1318
    %v1335 = vadd.f32 %v1319, %v1327
    %v1336 = vadd.f32 %v1320, %v1328
    %v1337 = vadd.f32 %v1321, %v1329
    %v1338 = vadd.f32 %v1322, %v1330
    %v1339 = vadd.f32 %v1323, %v1331
    %v1340 = vadd.f32 %v1324, %v1332
    %v1341 = vadd.f32 %v1325, %v1333
    %v1342 = vadd.f32 %v1326, %v1334
    %v1343 = vadd.f32 %v1335, %v1279
    %v1344 = vadd.f32 %v1336, %v1280
    %v1345 = vadd.f32 %v1337, %v1281
    %v1346 = vadd.f32 %v1338, %v1282
    %v1347 = vadd.f32 %v1339, %v1283
    %v1348 = vadd.f32 %v1340, %v1284
    %v1349 = vadd.f32 %v1341, %v1285
    %v1350 = vadd.f32 %v1342, %v1286
    %1351 = vset.pattern.permute.xlu0 18
    %1352 = vperm.xlu0 %1351, %v487
    %v1353 = vpop.permute.xlu0 %1352
    %1355 = vset.pattern.permute.xlu0 18
    %1356 = vperm.xlu0 %1355, %v488
    %v1357 = vpop.permute.xlu0 %1356
    %1359 = vset.pattern.permute.xlu0 18
    %1360 = vperm.xlu0 %1359, %v489
    %v1361 = vpop.permute.xlu0 %1360
    %1363 = vset.pattern.permute.xlu0 18
    %1364 = vperm.xlu0 %1363, %v490
    %v1365 = vpop.permute.xlu0 %1364
    %1367 = vset.pattern.permute.xlu0 18
    %1368 = vperm.xlu0 %1367, %v491
    %v1369 = vpop.permute.xlu0 %1368
    %1371 = vset.pattern.permute.xlu0 18
    %1372 = vperm.xlu0 %1371, %v492
    %v1373 = vpop.permute.xlu0 %1372
    %1375 = vset.pattern.permute.xlu0 18
    %1376 = vperm.xlu0 %1375, %v493
    %v1377 = vpop.permute.xlu0 %1376
    %1379 = vset.pattern.permute.xlu0 18
    %1380 = vperm.xlu0 %1379, %v494
    %v1381 = vpop.permute.xlu0 %1380
    %v1383 = vmul.f32 %v1353, %v297
    %v1384 = vmul.f32 %v1357, %v298
    %v1385 = vmul.f32 %v1361, %v299
    %v1386 = vmul.f32 %v1365, %v300
    %v1387 = vmul.f32 %v1369, %v301
    %v1388 = vmul.f32 %v1373, %v302
    %v1389 = vmul.f32 %v1377, %v303
    %v1390 = vmul.f32 %v1381, %v304
    %1391 = vset.pattern.permute.xlu0 19
    %1392 = vperm.xlu0 %1391, %v487
    %v1393 = vpop.permute.xlu0 %1392
    %1395 = vset.pattern.permute.xlu0 19
    %1396 = vperm.xlu0 %1395, %v488
    %v1397 = vpop.permute.xlu0 %1396
    %1399 = vset.pattern.permute.xlu0 19
    %1400 = vperm.xlu0 %1399, %v489
    %v1401 = vpop.permute.xlu0 %1400
    %1403 = vset.pattern.permute.xlu0 19
    %1404 = vperm.xlu0 %1403, %v490
    %v1405 = vpop.permute.xlu0 %1404
    %1407 = vset.pattern.permute.xlu0 19
    %1408 = vperm.xlu0 %1407, %v491
    %v1409 = vpop.permute.xlu0 %1408
    %1411 = vset.pattern.permute.xlu0 19
    %1412 = vperm.xlu0 %1411, %v492
    %v1413 = vpop.permute.xlu0 %1412
    %1415 = vset.pattern.permute.xlu0 19
    %1416 = vperm.xlu0 %1415, %v493
    %v1417 = vpop.permute.xlu0 %1416
    %1419 = vset.pattern.permute.xlu0 19
    %1420 = vperm.xlu0 %1419, %v494
    %v1421 = vpop.permute.xlu0 %1420
    %v1423 = vmul.f32 %v1393, %v323
    %v1424 = vmul.f32 %v1397, %v324
    %v1425 = vmul.f32 %v1401, %v325
    %v1426 = vmul.f32 %v1405, %v326
    %v1427 = vmul.f32 %v1409, %v327
    %v1428 = vmul.f32 %v1413, %v328
    %v1429 = vmul.f32 %v1417, %v329
    %v1430 = vmul.f32 %v1421, %v330
    %1431 = vset.pattern.permute.xlu0 20
    %1432 = vperm.xlu0 %1431, %v487
    %v1433 = vpop.permute.xlu0 %1432
    %1435 = vset.pattern.permute.xlu0 20
    %1436 = vperm.xlu0 %1435, %v488
    %v1437 = vpop.permute.xlu0 %1436
    %1439 = vset.pattern.permute.xlu0 20
    %1440 = vperm.xlu0 %1439, %v489
    %v1441 = vpop.permute.xlu0 %1440
    %1443 = vset.pattern.permute.xlu0 20
    %1444 = vperm.xlu0 %1443, %v490
    %v1445 = vpop.permute.xlu0 %1444
    %1447 = vset.pattern.permute.xlu0 20
    %1448 = vperm.xlu0 %1447, %v491
    %v1449 = vpop.permute.xlu0 %1448
    %1451 = vset.pattern.permute.xlu0 20
    %1452 = vperm.xlu0 %1451, %v492
    %v1453 = vpop.permute.xlu0 %1452
    %1455 = vset.pattern.permute.xlu0 20
    %1456 = vperm.xlu0 %1455, %v493
    %v1457 = vpop.permute.xlu0 %1456
    %1459 = vset.pattern.permute.xlu0 20
    %1460 = vperm.xlu0 %1459, %v494
    %v1461 = vpop.permute.xlu0 %1460
    %v1463 = vmul.f32 %v1433, %v349
    %v1464 = vmul.f32 %v1437, %v350
    %v1465 = vmul.f32 %v1441, %v351
    %v1466 = vmul.f32 %v1445, %v352
    %v1467 = vmul.f32 %v1449, %v353
    %v1468 = vmul.f32 %v1453, %v354
    %v1469 = vmul.f32 %v1457, %v355
    %v1470 = vmul.f32 %v1461, %v356
    %1471 = vset.pattern.permute.xlu0 21
    %1472 = vperm.xlu0 %1471, %v487
    %v1473 = vpop.permute.xlu0 %1472
    %1475 = vset.pattern.permute.xlu0 21
    %1476 = vperm.xlu0 %1475, %v488
    %v1477 = vpop.permute.xlu0 %1476
    %1479 = vset.pattern.permute.xlu0 21
    %1480 = vperm.xlu0 %1479, %v489
    %v1481 = vpop.permute.xlu0 %1480
    %1483 = vset.pattern.permute.xlu0 21
    %1484 = vperm.xlu0 %1483, %v490
    %v1485 = vpop.permute.xlu0 %1484
    %1487 = vset.pattern.permute.xlu0 21
    %1488 = vperm.xlu0 %1487, %v491
    %v1489 = vpop.permute.xlu0 %1488
    %1491 = vset.pattern.permute.xlu0 21
    %1492 = vperm.xlu0 %1491, %v492
    %v1493 = vpop.permute.xlu0 %1492
    %1495 = vset.pattern.permute.xlu0 21
    %1496 = vperm.xlu0 %1495, %v493
    %v1497 = vpop.permute.xlu0 %1496
    %1499 = vset.pattern.permute.xlu0 21
    %1500 = vperm.xlu0 %1499, %v494
    %v1501 = vpop.permute.xlu0 %1500
    %v1503 = vmul.f32 %v1473, %v375
    %v1504 = vmul.f32 %v1477, %v376
    %v1505 = vmul.f32 %v1481, %v377
    %v1506 = vmul.f32 %v1485, %v378
    %v1507 = vmul.f32 %v1489, %v379
    %v1508 = vmul.f32 %v1493, %v380
    %v1509 = vmul.f32 %v1497, %v381
    %v1510 = vmul.f32 %v1501, %v382
    %1511 = vset.pattern.permute.xlu0 22
    %1512 = vperm.xlu0 %1511, %v487
    %v1513 = vpop.permute.xlu0 %1512
    %1515 = vset.pattern.permute.xlu0 22
    %1516 = vperm.xlu0 %1515, %v488
    %v1517 = vpop.permute.xlu0 %1516
    %1519 = vset.pattern.permute.xlu0 22
    %1520 = vperm.xlu0 %1519, %v489
    %v1521 = vpop.permute.xlu0 %1520
    %1523 = vset.pattern.permute.xlu0 22
    %1524 = vperm.xlu0 %1523, %v490
    %v1525 = vpop.permute.xlu0 %1524
    %1527 = vset.pattern.permute.xlu0 22
    %1528 = vperm.xlu0 %1527, %v491
    %v1529 = vpop.permute.xlu0 %1528
    %1531 = vset.pattern.permute.xlu0 22
    %1532 = vperm.xlu0 %1531, %v492
    %v1533 = vpop.permute.xlu0 %1532
    %1535 = vset.pattern.permute.xlu0 22
    %1536 = vperm.xlu0 %1535, %v493
    %v1537 = vpop.permute.xlu0 %1536
    %1539 = vset.pattern.permute.xlu0 22
    %1540 = vperm.xlu0 %1539, %v494
    %v1541 = vpop.permute.xlu0 %1540
    %v1543 = vmul.f32 %v1513, %v271
    %v1544 = vmul.f32 %v1517, %v272
    %v1545 = vmul.f32 %v1521, %v273
    %v1546 = vmul.f32 %v1525, %v274
    %v1547 = vmul.f32 %v1529, %v275
    %v1548 = vmul.f32 %v1533, %v276
    %v1549 = vmul.f32 %v1537, %v277
    %v1550 = vmul.f32 %v1541, %v278
    %1551 = vset.pattern.permute.xlu0 23
    %1552 = vperm.xlu0 %1551, %v487
    %v1553 = vpop.permute.xlu0 %1552
    %1555 = vset.pattern.permute.xlu0 23
    %1556 = vperm.xlu0 %1555, %v488
    %v1557 = vpop.permute.xlu0 %1556
    %1559 = vset.pattern.permute.xlu0 23
    %1560 = vperm.xlu0 %1559, %v489
    %v1561 = vpop.permute.xlu0 %1560
    %1563 = vset.pattern.permute.xlu0 23
    %1564 = vperm.xlu0 %1563, %v490
    %v1565 = vpop.permute.xlu0 %1564
    %1567 = vset.pattern.permute.xlu0 23
    %1568 = vperm.xlu0 %1567, %v491
    %v1569 = vpop.permute.xlu0 %1568
    %1571 = vset.pattern.permute.xlu0 23
    %1572 = vperm.xlu0 %1571, %v492
    %v1573 = vpop.permute.xlu0 %1572
    %1575 = vset.pattern.permute.xlu0 23
    %1576 = vperm.xlu0 %1575, %v493
    %v1577 = vpop.permute.xlu0 %1576
    %1579 = vset.pattern.permute.xlu0 23
    %1580 = vperm.xlu0 %1579, %v494
    %v1581 = vpop.permute.xlu0 %1580
    %v1583 = vmul.f32 %v1553, %v401
    %v1584 = vmul.f32 %v1557, %v402
    %v1585 = vmul.f32 %v1561, %v403
    %v1586 = vmul.f32 %v1565, %v404
    %v1587 = vmul.f32 %v1569, %v405
    %v1588 = vmul.f32 %v1573, %v406
    %v1589 = vmul.f32 %v1577, %v407
    %v1590 = vmul.f32 %v1581, %v408
    %1591 = vset.pattern.permute.xlu0 24
    %1592 = vperm.xlu0 %1591, %v487
    %v1593 = vpop.permute.xlu0 %1592
    %1595 = vset.pattern.permute.xlu0 24
    %1596 = vperm.xlu0 %1595, %v488
    %v1597 = vpop.permute.xlu0 %1596
    %1599 = vset.pattern.permute.xlu0 24
    %1600 = vperm.xlu0 %1599, %v489
    %v1601 = vpop.permute.xlu0 %1600
    %1603 = vset.pattern.permute.xlu0 24
    %1604 = vperm.xlu0 %1603, %v490
    %v1605 = vpop.permute.xlu0 %1604
    %1607 = vset.pattern.permute.xlu0 24
    %1608 = vperm.xlu0 %1607, %v491
    %v1609 = vpop.permute.xlu0 %1608
    %1611 = vset.pattern.permute.xlu0 24
    %1612 = vperm.xlu0 %1611, %v492
    %v1613 = vpop.permute.xlu0 %1612
    %1615 = vset.pattern.permute.xlu0 24
    %1616 = vperm.xlu0 %1615, %v493
    %v1617 = vpop.permute.xlu0 %1616
    %1619 = vset.pattern.permute.xlu0 24
    %1620 = vperm.xlu0 %1619, %v494
    %v1621 = vpop.permute.xlu0 %1620
    %v1623 = vmul.f32 %v1593, %v427
    %v1624 = vmul.f32 %v1597, %v428
    %v1625 = vmul.f32 %v1601, %v429
    %v1626 = vmul.f32 %v1605, %v430
    %v1627 = vmul.f32 %v1609, %v431
    %v1628 = vmul.f32 %v1613, %v432
    %v1629 = vmul.f32 %v1617, %v433
    %v1630 = vmul.f32 %v1621, %v434
    %1631 = vset.pattern.permute.xlu0 25
    %1632 = vperm.xlu0 %1631, %v487
    %v1633 = vpop.permute.xlu0 %1632
    %1635 = vset.pattern.permute.xlu0 25
    %1636 = vperm.xlu0 %1635, %v488
    %v1637 = vpop.permute.xlu0 %1636
    %1639 = vset.pattern.permute.xlu0 25
    %1640 = vperm.xlu0 %1639, %v489
    %v1641 = vpop.permute.xlu0 %1640
    %1643 = vset.pattern.permute.xlu0 25
    %1644 = vperm.xlu0 %1643, %v490
    %v1645 = vpop.permute.xlu0 %1644
    %1647 = vset.pattern.permute.xlu0 25
    %1648 = vperm.xlu0 %1647, %v491
    %v1649 = vpop.permute.xlu0 %1648
    %1651 = vset.pattern.permute.xlu0 25
    %1652 = vperm.xlu0 %1651, %v492
    %v1653 = vpop.permute.xlu0 %1652
    %1655 = vset.pattern.permute.xlu0 25
    %1656 = vperm.xlu0 %1655, %v493
    %v1657 = vpop.permute.xlu0 %1656
    %1659 = vset.pattern.permute.xlu0 25
    %1660 = vperm.xlu0 %1659, %v494
    %v1661 = vpop.permute.xlu0 %1660
    %v1663 = vmul.f32 %v1633, %v453
    %v1664 = vmul.f32 %v1637, %v454
    %v1665 = vmul.f32 %v1641, %v455
    %v1666 = vmul.f32 %v1645, %v456
    %v1667 = vmul.f32 %v1649, %v457
    %v1668 = vmul.f32 %v1653, %v458
    %v1669 = vmul.f32 %v1657, %v459
    %v1670 = vmul.f32 %v1661, %v460
    %1671 = vset.pattern.permute.xlu0 26
    %1672 = vperm.xlu0 %1671, %v487
    %v1673 = vpop.permute.xlu0 %1672
    %1675 = vset.pattern.permute.xlu0 26
    %1676 = vperm.xlu0 %1675, %v488
    %v1677 = vpop.permute.xlu0 %1676
    %1679 = vset.pattern.permute.xlu0 26
    %1680 = vperm.xlu0 %1679, %v489
    %v1681 = vpop.permute.xlu0 %1680
    %1683 = vset.pattern.permute.xlu0 26
    %1684 = vperm.xlu0 %1683, %v490
    %v1685 = vpop.permute.xlu0 %1684
    %1687 = vset.pattern.permute.xlu0 26
    %1688 = vperm.xlu0 %1687, %v491
    %v1689 = vpop.permute.xlu0 %1688
    %1691 = vset.pattern.permute.xlu0 26
    %1692 = vperm.xlu0 %1691, %v492
    %v1693 = vpop.permute.xlu0 %1692
    %1695 = vset.pattern.permute.xlu0 26
    %1696 = vperm.xlu0 %1695, %v493
    %v1697 = vpop.permute.xlu0 %1696
    %1699 = vset.pattern.permute.xlu0 26
    %1700 = vperm.xlu0 %1699, %v494
    %v1701 = vpop.permute.xlu0 %1700
    %v1703 = vmul.f32 %v1673, %v479
    %v1704 = vmul.f32 %v1677, %v480
    %v1705 = vmul.f32 %v1681, %v481
    %v1706 = vmul.f32 %v1685, %v482
    %v1707 = vmul.f32 %v1689, %v483
    %v1708 = vmul.f32 %v1693, %v484
    %v1709 = vmul.f32 %v1697, %v485
    %v1710 = vmul.f32 %v1701, %v486
    %v1711 = vadd.f32 %v1383, %v1423
    %v1712 = vadd.f32 %v1384, %v1424
    %v1713 = vadd.f32 %v1385, %v1425
    %v1714 = vadd.f32 %v1386, %v1426
    %v1715 = vadd.f32 %v1387, %v1427
    %v1716 = vadd.f32 %v1388, %v1428
    %v1717 = vadd.f32 %v1389, %v1429
    %v1718 = vadd.f32 %v1390, %v1430
    %v1719 = vadd.f32 %v1463, %v1503
    %v1720 = vadd.f32 %v1464, %v1504
    %v1721 = vadd.f32 %v1465, %v1505
    %v1722 = vadd.f32 %v1466, %v1506
    %v1723 = vadd.f32 %v1467, %v1507
    %v1724 = vadd.f32 %v1468, %v1508
    %v1725 = vadd.f32 %v1469, %v1509
    %v1726 = vadd.f32 %v1470, %v1510
    %v1727 = vadd.f32 %v1543, %v1583
    %v1728 = vadd.f32 %v1544, %v1584
    %v1729 = vadd.f32 %v1545, %v1585
    %v1730 = vadd.f32 %v1546, %v1586
    %v1731 = vadd.f32 %v1547, %v1587
    %v1732 = vadd.f32 %v1548, %v1588
    %v1733 = vadd.f32 %v1549, %v1589
    %v1734 = vadd.f32 %v1550, %v1590
    %v1735 = vadd.f32 %v1623, %v1663
    %v1736 = vadd.f32 %v1624, %v1664
    %v1737 = vadd.f32 %v1625, %v1665
    %v1738 = vadd.f32 %v1626, %v1666
    %v1739 = vadd.f32 %v1627, %v1667
    %v1740 = vadd.f32 %v1628, %v1668
    %v1741 = vadd.f32 %v1629, %v1669
    %v1742 = vadd.f32 %v1630, %v1670
    %v1743 = vadd.f32 %v1711, %v1719
    %v1744 = vadd.f32 %v1712, %v1720
    %v1745 = vadd.f32 %v1713, %v1721
    %v1746 = vadd.f32 %v1714, %v1722
    %v1747 = vadd.f32 %v1715, %v1723
    %v1748 = vadd.f32 %v1716, %v1724
    %v1749 = vadd.f32 %v1717, %v1725
    %v1750 = vadd.f32 %v1718, %v1726
    %v1751 = vadd.f32 %v1727, %v1735
    %v1752 = vadd.f32 %v1728, %v1736
    %v1753 = vadd.f32 %v1729, %v1737
    %v1754 = vadd.f32 %v1730, %v1738
    %v1755 = vadd.f32 %v1731, %v1739
    %v1756 = vadd.f32 %v1732, %v1740
    %v1757 = vadd.f32 %v1733, %v1741
    %v1758 = vadd.f32 %v1734, %v1742
    %v1759 = vadd.f32 %v1743, %v1751
    %v1760 = vadd.f32 %v1744, %v1752
    %v1761 = vadd.f32 %v1745, %v1753
    %v1762 = vadd.f32 %v1746, %v1754
    %v1763 = vadd.f32 %v1747, %v1755
    %v1764 = vadd.f32 %v1748, %v1756
    %v1765 = vadd.f32 %v1749, %v1757
    %v1766 = vadd.f32 %v1750, %v1758
    %v1767 = vadd.f32 %v1759, %v1703
    %v1768 = vadd.f32 %v1760, %v1704
    %v1769 = vadd.f32 %v1761, %v1705
    %v1770 = vadd.f32 %v1762, %v1706
    %v1771 = vadd.f32 %v1763, %v1707
    %v1772 = vadd.f32 %v1764, %v1708
    %v1773 = vadd.f32 %v1765, %v1709
    %v1774 = vadd.f32 %v1766, %v1710
    %1775 = vrot.lane.b32.xlu0 %v919, 16
    %v1776 = vpop.permute.xlu0 %1775
    %1777 = vrot.lane.b32.xlu0 %v920, 16
    %v1778 = vpop.permute.xlu0 %1777
    %1779 = vrot.lane.b32.xlu0 %v921, 16
    %v1780 = vpop.permute.xlu0 %1779
    %1781 = vrot.lane.b32.xlu0 %v922, 16
    %v1782 = vpop.permute.xlu0 %1781
    %1783 = vrot.lane.b32.xlu0 %v923, 16
    %v1784 = vpop.permute.xlu0 %1783
    %1785 = vrot.lane.b32.xlu0 %v924, 16
    %v1786 = vpop.permute.xlu0 %1785
    %1787 = vrot.lane.b32.xlu0 %v925, 16
    %v1788 = vpop.permute.xlu0 %1787
    %1789 = vrot.lane.b32.xlu0 %v926, 16
    %v1790 = vpop.permute.xlu0 %1789
    %1791 = vrot.lane.b32.xlu0 %v1767, 112
    %v1792 = vpop.permute.xlu0 %1791
    %1793 = vrot.lane.b32.xlu0 %v1768, 112
    %v1794 = vpop.permute.xlu0 %1793
    %1795 = vrot.lane.b32.xlu0 %v1769, 112
    %v1796 = vpop.permute.xlu0 %1795
    %1797 = vrot.lane.b32.xlu0 %v1770, 112
    %v1798 = vpop.permute.xlu0 %1797
    %1799 = vrot.lane.b32.xlu0 %v1771, 112
    %v1800 = vpop.permute.xlu0 %1799
    %1801 = vrot.lane.b32.xlu0 %v1772, 112
    %v1802 = vpop.permute.xlu0 %1801
    %1803 = vrot.lane.b32.xlu0 %v1773, 112
    %v1804 = vpop.permute.xlu0 %1803
    %1805 = vrot.lane.b32.xlu0 %v1774, 112
    %v1806 = vpop.permute.xlu0 %1805
    %v1807 = vld [vmem:[%s6] sm:$0x1]
    %v1808 = vperm.slane %v1807, 0
    %v1809 = vmul.f32 %v1808, %v1776
    %v1810 = vmul.f32 %v1808, %v1778
    %v1811 = vmul.f32 %v1808, %v1780
    %v1812 = vmul.f32 %v1808, %v1782
    %v1813 = vmul.f32 %v1808, %v1784
    %v1814 = vmul.f32 %v1808, %v1786
    %v1815 = vmul.f32 %v1808, %v1788
    %v1816 = vmul.f32 %v1808, %v1790
    %v1817 = vadd.f32 %v1343, %v1809
    %v1818 = vadd.f32 %v1344, %v1810
    %v1819 = vadd.f32 %v1345, %v1811
    %v1820 = vadd.f32 %v1346, %v1812
    %v1821 = vadd.f32 %v1347, %v1813
    %v1822 = vadd.f32 %v1348, %v1814
    %v1823 = vadd.f32 %v1349, %v1815
    %v1824 = vadd.f32 %v1350, %v1816
    %v1825 = vld [vmem:[%s6 + $0x1] sm:$0x1]
    %v1826 = vperm.slane %v1825, 0
    %v1827 = vmul.f32 %v1826, %v1792
    %v1828 = vmul.f32 %v1826, %v1794
    %v1829 = vmul.f32 %v1826, %v1796
    %v1830 = vmul.f32 %v1826, %v1798
    %v1831 = vmul.f32 %v1826, %v1800
    %v1832 = vmul.f32 %v1826, %v1802
    %v1833 = vmul.f32 %v1826, %v1804
    %v1834 = vmul.f32 %v1826, %v1806
    %v1835 = vadd.f32 %v1817, %v1827
    %v1836 = vadd.f32 %v1818, %v1828
    %v1837 = vadd.f32 %v1819, %v1829
    %v1838 = vadd.f32 %v1820, %v1830
    %v1839 = vadd.f32 %v1821, %v1831
    %v1840 = vadd.f32 %v1822, %v1832
    %v1841 = vadd.f32 %v1823, %v1833
    %v1842 = vadd.f32 %v1824, %v1834
    %v1843 = vld [vmem:[%s7] sm:$0xff]
    %v1844 = vld [vmem:[%s7 + $0x8] sm:$0xff]
    %v1845 = vld [vmem:[%s7 + $0x10] sm:$0xff]
    %v1846 = vld [vmem:[%s7 + $0x18] sm:$0xff]
    %v1847 = vld [vmem:[%s7 + $0x20] sm:$0xff]
    %v1848 = vld [vmem:[%s7 + $0x28] sm:$0xff]
    %v1849 = vld [vmem:[%s7 + $0x30] sm:$0xff]
    %v1850 = vld [vmem:[%s7 + $0x38] sm:$0xff]
    %1852 = vset.pattern.permute.xlu0 0
    %1853 = vperm.xlu0 %1852, %v1843
    %v1854 = vpop.permute.xlu0 %1853
    %1857 = vset.pattern.permute.xlu0 0
    %1858 = vperm.xlu0 %1857, %v1844
    %v1859 = vpop.permute.xlu0 %1858
    %1862 = vset.pattern.permute.xlu0 0
    %1863 = vperm.xlu0 %1862, %v1845
    %v1864 = vpop.permute.xlu0 %1863
    %1867 = vset.pattern.permute.xlu0 0
    %1868 = vperm.xlu0 %1867, %v1846
    %v1869 = vpop.permute.xlu0 %1868
    %1872 = vset.pattern.permute.xlu0 0
    %1873 = vperm.xlu0 %1872, %v1847
    %v1874 = vpop.permute.xlu0 %1873
    %1877 = vset.pattern.permute.xlu0 0
    %1878 = vperm.xlu0 %1877, %v1848
    %v1879 = vpop.permute.xlu0 %1878
    %1882 = vset.pattern.permute.xlu0 0
    %1883 = vperm.xlu0 %1882, %v1849
    %v1884 = vpop.permute.xlu0 %1883
    %1887 = vset.pattern.permute.xlu0 0
    %1888 = vperm.xlu0 %1887, %v1850
    %v1889 = vpop.permute.xlu0 %1888
    %v1891 = vmul.f32 %v1835, %v1854
    %v1892 = vmul.f32 %v1836, %v1859
    %v1893 = vmul.f32 %v1837, %v1864
    %v1894 = vmul.f32 %v1838, %v1869
    %v1895 = vmul.f32 %v1839, %v1874
    %v1896 = vmul.f32 %v1840, %v1879
    %v1897 = vmul.f32 %v1841, %v1884
    %v1898 = vmul.f32 %v1842, %v1889
    %v1899 = vld [vmem:[%s8] sm:$0xff]
    %v1900 = vld [vmem:[%s8 + $0x8] sm:$0xff]
    %v1901 = vld [vmem:[%s8 + $0x10] sm:$0xff]
    %v1902 = vld [vmem:[%s8 + $0x18] sm:$0xff]
    %v1903 = vld [vmem:[%s8 + $0x20] sm:$0xff]
    %v1904 = vld [vmem:[%s8 + $0x28] sm:$0xff]
    %v1905 = vld [vmem:[%s8 + $0x30] sm:$0xff]
    %v1906 = vld [vmem:[%s8 + $0x38] sm:$0xff]
    %1908 = vset.pattern.permute.xlu0 0
    %1909 = vperm.xlu0 %1908, %v1899
    %v1910 = vpop.permute.xlu0 %1909
    %1913 = vset.pattern.permute.xlu0 0
    %1914 = vperm.xlu0 %1913, %v1900
    %v1915 = vpop.permute.xlu0 %1914
    %1918 = vset.pattern.permute.xlu0 0
    %1919 = vperm.xlu0 %1918, %v1901
    %v1920 = vpop.permute.xlu0 %1919
    %1923 = vset.pattern.permute.xlu0 0
    %1924 = vperm.xlu0 %1923, %v1902
    %v1925 = vpop.permute.xlu0 %1924
    %1928 = vset.pattern.permute.xlu0 0
    %1929 = vperm.xlu0 %1928, %v1903
    %v1930 = vpop.permute.xlu0 %1929
    %1933 = vset.pattern.permute.xlu0 0
    %1934 = vperm.xlu0 %1933, %v1904
    %v1935 = vpop.permute.xlu0 %1934
    %1938 = vset.pattern.permute.xlu0 0
    %1939 = vperm.xlu0 %1938, %v1905
    %v1940 = vpop.permute.xlu0 %1939
    %1943 = vset.pattern.permute.xlu0 0
    %1944 = vperm.xlu0 %1943, %v1906
    %v1945 = vpop.permute.xlu0 %1944
    %v1947 = vadd.f32 %v1891, %v1910
    %v1948 = vadd.f32 %v1892, %v1915
    %v1949 = vadd.f32 %v1893, %v1920
    %v1950 = vadd.f32 %v1894, %v1925
    %v1951 = vadd.f32 %v1895, %v1930
    %v1952 = vadd.f32 %v1896, %v1935
    %v1953 = vadd.f32 %v1897, %v1940
    %v1954 = vadd.f32 %v1898, %v1945
    %vm1955 = vcmp.gt.f32.partialorder %v1947, 0.0
    %vm1956 = vcmp.gt.f32.partialorder %v1948, 0.0
    %vm1957 = vcmp.gt.f32.partialorder %v1949, 0.0
    %vm1958 = vcmp.gt.f32.partialorder %v1950, 0.0
    %vm1959 = vcmp.gt.f32.partialorder %v1951, 0.0
    %vm1960 = vcmp.gt.f32.partialorder %v1952, 0.0
    %vm1961 = vcmp.gt.f32.partialorder %v1953, 0.0
    %vm1962 = vcmp.gt.f32.partialorder %v1954, 0.0
    %v1963 = vmin.f32 %v1947, 0.0
    %v1964 = vmin.f32 %v1948, 0.0
    %v1965 = vmin.f32 %v1949, 0.0
    %v1966 = vmin.f32 %v1950, 0.0
    %v1967 = vmin.f32 %v1951, 0.0
    %v1968 = vmin.f32 %v1952, 0.0
    %v1969 = vmin.f32 %v1953, 0.0
    %v1970 = vmin.f32 %v1954, 0.0
    %v1971 = vmul.f32 %v1963, 1.442695
    %v1972 = vpow.pop %v1971
    %v1973 = vmul.f32 %v1964, 1.442695
    %v1974 = vpow.pop %v1973
    %v1975 = vmul.f32 %v1965, 1.442695
    %v1976 = vpow.pop %v1975
    %v1977 = vmul.f32 %v1966, 1.442695
    %v1978 = vpow.pop %v1977
    %v1979 = vmul.f32 %v1967, 1.442695
    %v1980 = vpow.pop %v1979
    %v1981 = vmul.f32 %v1968, 1.442695
    %v1982 = vpow.pop %v1981
    %v1983 = vmul.f32 %v1969, 1.442695
    %v1984 = vpow.pop %v1983
    %v1985 = vmul.f32 %v1970, 1.442695
    %v1986 = vpow.pop %v1985
    %v1987 = vsub.f32 %v1972, 1.0
    %v1988 = vsub.f32 %v1974, 1.0
    %v1989 = vsub.f32 %v1976, 1.0
    %v1990 = vsub.f32 %v1978, 1.0
    %v1991 = vsub.f32 %v1980, 1.0
    %v1992 = vsub.f32 %v1982, 1.0
    %v1993 = vsub.f32 %v1984, 1.0
    %v1994 = vsub.f32 %v1986, 1.0
    %v1995 = vsel %vm1955, %v1947, %v1987
    %v1996 = vsel %vm1956, %v1948, %v1988
    %v1997 = vsel %vm1957, %v1949, %v1989
    %v1998 = vsel %vm1958, %v1950, %v1990
    %v1999 = vsel %vm1959, %v1951, %v1991
    %v2000 = vsel %vm1960, %v1952, %v1992
    %v2001 = vsel %vm1961, %v1953, %v1993
    %v2002 = vsel %vm1962, %v1954, %v1994
    %v2003 = vld [vmem:[%s9] sm:$0xf]
    %v2004 = vld [vmem:[%s9 + $0x4] sm:$0xf]
    %v2005 = vld [vmem:[%s9 + $0x8] sm:$0xf]
    %v2006 = vld [vmem:[%s9 + $0xc] sm:$0xf]
    %v2007 = vpack.c.bf16 %v1996, %v1995
    %v2008 = vpack.c.bf16 %v1998, %v1997
    %v2009 = vpack.c.bf16 %v2000, %v1999
    %v2010 = vpack.c.bf16 %v2002, %v2001
    %v2015 = vunpack.c.l.b16 %v2003
    %v2016 = vunpack.c.l.b16 %v2004
    %v2017 = vunpack.c.l.b16 %v2005
    %v2018 = vunpack.c.l.b16 %v2006
    %v2019 = vpack.c.b16 %v2016, %v2015
    %v2020 = vpack.c.b16 %v2018, %v2017
    %vm2021 = vcmask 523264
    %v2023 = vsel %vm2021, %v2019, 0
    %v2026 = vsel %vm2021, %v2020, 0
    %2028 = vmatpush.bf16.msra.mxu0 0
    %2029 = vmatpush.bf16.msra.mxu0 0
    %2030 = vmatpush.bf16.msra.mxu0 0
    %2031 = vmatpush.bf16.msra.mxu0 0
    %2032 = vmatpush.bf16.msra.mxu0 %v2010
    %2033 = vmatpush.bf16.msra.mxu0 %v2009
    %2034 = vmatpush.bf16.msra.mxu0 %v2008
    %2035 = vmatpush.bf16.msra.mxu0 %v2007
    %2036 = vmatmul.bf16.gmra.mxu0 %v2023
    %v2037 = vpop.f32.mrf.mxu0
    %v2038 = vadd.f32 0.0, %v2037
    %v2039 = vpop.f32.mrf.mxu0
    %v2040 = vadd.f32 0.0, %v2039
    %2041 = vmatmul.bf16.gmra.mxu0 %v2026
    %v2042 = vpop.f32.mrf.mxu0
    %v2043 = vadd.f32 0.0, %v2042
    %v2044 = vpop.f32.mrf.mxu0
    %v2045 = vadd.f32 0.0, %v2044
    %2046 = vdwg.mxu0
    %v2047 = vld [vmem:[%s10] sm:$0xff]
    %v2048 = vld [vmem:[%s10 + $0x8] sm:$0xff]
    %v2049 = vld [vmem:[%s10 + $0x10] sm:$0xff]
    %v2050 = vld [vmem:[%s10 + $0x18] sm:$0xff]
    %2052 = vset.pattern.permute.xlu0 0
    %2053 = vperm.xlu0 %2052, %v2047
    %v2054 = vpop.permute.xlu0 %2053
    %2057 = vset.pattern.permute.xlu0 0
    %2058 = vperm.xlu0 %2057, %v2048
    %v2059 = vpop.permute.xlu0 %2058
    %2062 = vset.pattern.permute.xlu0 0
    %2063 = vperm.xlu0 %2062, %v2049
    %v2064 = vpop.permute.xlu0 %2063
    %2067 = vset.pattern.permute.xlu0 0
    %2068 = vperm.xlu0 %2067, %v2050
    %v2069 = vpop.permute.xlu0 %2068
    %v2071 = vmul.f32 %v2038, %v2054
    %v2072 = vmul.f32 %v2040, %v2059
    %v2073 = vmul.f32 %v2043, %v2064
    %v2074 = vmul.f32 %v2045, %v2069
    %v2075 = vld [vmem:[%s11] sm:$0xff]
    %v2076 = vld [vmem:[%s11 + $0x8] sm:$0xff]
    %v2077 = vld [vmem:[%s11 + $0x10] sm:$0xff]
    %v2078 = vld [vmem:[%s11 + $0x18] sm:$0xff]
    %2080 = vset.pattern.permute.xlu0 0
    %2081 = vperm.xlu0 %2080, %v2075
    %v2082 = vpop.permute.xlu0 %2081
    %2085 = vset.pattern.permute.xlu0 0
    %2086 = vperm.xlu0 %2085, %v2076
    %v2087 = vpop.permute.xlu0 %2086
    %2090 = vset.pattern.permute.xlu0 0
    %2091 = vperm.xlu0 %2090, %v2077
    %v2092 = vpop.permute.xlu0 %2091
    %2095 = vset.pattern.permute.xlu0 0
    %2096 = vperm.xlu0 %2095, %v2078
    %v2097 = vpop.permute.xlu0 %2096
    %v2099 = vadd.f32 %v2071, %v2082
    %v2100 = vadd.f32 %v2072, %v2087
    %v2101 = vadd.f32 %v2073, %v2092
    %v2102 = vadd.f32 %v2074, %v2097
    %2103 = vst [vmem:[#allocation2] sm:$0xff] %v2099
    %2104 = vst [vmem:[#allocation2 + $0x8] sm:$0xff] %v2100
    %2105 = vst [vmem:[#allocation2 + $0x10] sm:$0xff] %v2101
    %2106 = vst [vmem:[#allocation2 + $0x18] sm:$0xff] %v2102
    // Predicated region
    $region50: #{tpu_custom_call.1} parent=1 // pred_check
      _
    $region51: #{tpu_custom_call.1} parent=1 // pred_check_branch
      %2108 = sbr.rel (0) target = $region53
    $region52: #{tpu_custom_call.1} parent=1 // pred_region
      %2110 = vsyncadd [#allocation3], 0
      %s2111 = sshll.u32 [#allocation2], 4
      %s2112 = int_to_ptr.vmem [resolvable:$true] %s2111
      %s2113 = sshll.u32 %s12, 4
      %s2114 = int_to_ptr.hbm [resolvable:$true] %s2113
      %2119 = dma.vmem_to_hbm [thread:$0]  %s2112, 512, %s2114, [#allocation3], 128, 128, 8
    $region53: #{tpu_custom_call.1} parent=1 // pred_fallthru
      _
    // Predicated region
    $region54: #{tpu_custom_call.1} parent=1 // pred_check
      _
    $region55: #{tpu_custom_call.1} parent=1 // pred_check_branch
      %2121 = sbr.rel (0) target = $region57
    $region56: #{tpu_custom_call.1} parent=1 // pred_region
      %2123 = dma.done [#allocation3], 512
    $region57: #{tpu_custom_call.1} parent=1 // pred_fallthru
      _
    %2124 = vsyncpa [#allocation3], 1

</llo_original>
